<compile_context>
chip_gen: v7x
topology: tpu7x:2x2x1
jax: 0.10.0
libtpu: 0.0.40
codegen_flags: <defaults>
</compile_context>

<pallas_src>
import functools

import jax
import jax.numpy as jnp
from jax.experimental import pallas as pl
from jax.experimental.pallas import tpu as pltpu

EPS = 1e-5
_MAX_TILE = 1024  # spatial rows per grid step; ~3-4 MiB live -> fits every gen's scoped VMEM


# ----------------------------------------------------------------------------
# Fused kernel body: one (image, spatial-tile) per grid step.
#   x block  : (1, 256, T) f32  (channels-first slice of the NCHW input)
#   output   : (1, 1, 128) f32  pooled partial sum for this tile (lane-dense)
# ----------------------------------------------------------------------------
def _netd1_kernel(x_ref,
                  w1_ref, b1_ref,
                  w2_ref, b2_ref,
                  w3_ref, b3_ref,
                  o_ref, *, hw, tile):
    # In-kernel (256, T) -> (T, 256) transpose (XLU) + bf16 cast for the MXU;
    # avoids a separate HBM transpose/cast pass in the wrapper.
    x = jnp.transpose(x_ref[0]).astype(jnp.bfloat16)                 # (T, 256)

    # conv1 (1x1) with BN1 scale pre-folded into the weights; add-shift + ReLU.
    a1 = jnp.dot(x, w1_ref[...], preferred_element_type=jnp.float32)
    h1 = jnp.maximum(a1 + b1_ref[...], 0.0).astype(jnp.bfloat16)     # (T, 256)

    # conv2 (1x1) + folded BN2 + ReLU
    a2 = jnp.dot(h1, w2_ref[...], preferred_element_type=jnp.float32)
    h2 = jnp.maximum(a2 + b2_ref[...], 0.0).astype(jnp.bfloat16)     # (T, 128)

    # conv3 (1x1) + folded BN3 + ReLU (kept f32 for the pooling reduction)
    a3 = jnp.dot(h2, w3_ref[...], preferred_element_type=jnp.float32)
    h3 = jnp.maximum(a3 + b3_ref[...], 0.0)                          # (T, 128) f32

    # Zero out rows past the true spatial extent for the ragged last tile
    # (select, not multiply, so garbage/NaN in the padded region cannot leak).
    if hw % tile != 0:
        j = pl.program_id(1)
        rows = jax.lax.broadcasted_iota(jnp.int32, h3.shape, 0)
        h3 = jnp.where(rows + j * tile < hw, h3, 0.0)

    # Pooled partial sum for this tile: 128-lane dense, unmasked store.
    o_ref[0] = jnp.sum(h3, axis=0, keepdims=True)                    # (1, 128)


@jax.jit
def netd1_forward(x_nchw, params):
    """x_nchw: (N, 256, H, W) float32 (PyTorch layout). Returns (N, 2) f32."""
    N, C, H, W = x_nchw.shape
    HW = H * W
    # Free reshape of the contiguous NCHW tensor; no transpose / cast pass.
    x = x_nchw.reshape(N, C, HW)

    # Spatial tile: full extent if small, else 1024 rows (multiple of 128).
    tile = HW if HW <= _MAX_TILE else _MAX_TILE
    n_tiles = pl.cdiv(HW, tile)

    kernel = functools.partial(_netd1_kernel, hw=HW, tile=tile)

    flops = 2 * N * HW * (256 * 256 + 256 * 128 + 128 * 128)
    bytes_accessed = (N * HW * 256 * 4                               # f32 input
                      + (256 * 256 + 256 * 128 + 128 * 128) * 2      # bf16 weights
                      + (256 + 128 + 128) * 4                        # f32 shifts
                      + N * n_tiles * 128 * 4)                       # f32 partial sums
    cost = pl.CostEstimate(flops=flops, transcendentals=0,
                           bytes_accessed=bytes_accessed)

    partial = pl.pallas_call(
        kernel,
        out_shape=jax.ShapeDtypeStruct((N, 1, n_tiles * 128), jnp.float32),
        grid=(N, n_tiles),
        in_specs=[
            # x tile: channels-first slice of one image.
            # (Tunable: pipeline_mode=pl.Buffered(3) once DMA jitter matters.)
            pl.BlockSpec((1, 256, tile), lambda n, j: (n, 0, j)),
            pl.BlockSpec((256, 256), lambda n, j: (0, 0)),   # w1 (BN1 folded, bf16)
            pl.BlockSpec((1, 256), lambda n, j: (0, 0)),     # bn1 shift (f32)
            pl.BlockSpec((256, 128), lambda n, j: (0, 0)),   # w2 (BN2 folded, bf16)
            pl.BlockSpec((1, 128), lambda n, j: (0, 0)),     # bn2 shift
            pl.BlockSpec((128, 128), lambda n, j: (0, 0)),   # w3 (BN3 folded, bf16)
            pl.BlockSpec((1, 128), lambda n, j: (0, 0)),     # bn3 shift
        ],
        # Each (image, tile) owns a distinct 128-lane segment -> both axes parallel.
        out_specs=pl.BlockSpec((1, 1, 128), lambda n, j: (n, 0, j)),
        compiler_params=pltpu.CompilerParams(
            dimension_semantics=("parallel", "parallel")),
        cost_estimate=cost,
    )(x,
      params["w1"], params["b1"],
      params["w2"], params["b2"],
      params["w3"], params["b3"])

    # Finalize in XLA: reduce partial sums, 1/HW normalization, fc(128 -> 2).
    pooled = partial.reshape(N, n_tiles, 128).sum(axis=1) * (1.0 / HW)
    return jnp.dot(pooled, params["fc_w"]) + params["fc_b"]


# ----------------------------------------------------------------------------
# Synthetic parameters (PyTorch layouts, f32 ground truth) + kernel prep + ref
# ----------------------------------------------------------------------------
def make_torch_params(key):
    ks = jax.random.split(key, 8)

    def conv_w(k, cout, cin):
        # nn.Conv2d(cin, cout, 1, bias=False).weight squeezed to (Cout, Cin).
        return 0.05 * jax.random.normal(k, (cout, cin), jnp.float32)

    def bn(k, c):
        kg, kb, km, kv = jax.random.split(k, 4)
        return dict(
            gamma=1.0 + 0.1 * jax.random.normal(kg, (c,), jnp.float32),
            beta=0.1 * jax.random.normal(kb, (c,), jnp.float32),
            mean=0.1 * jax.random.normal(km, (c,), jnp.float32),
            var=0.5 + jax.random.uniform(kv, (c,), jnp.float32),
        )

    return {
        "conv1_w": conv_w(ks[0], 256, 256), "bn1": bn(ks[1], 256),
        "conv2_w": conv_w(ks[2], 128, 256), "bn2": bn(ks[3], 128),
        "conv3_w": conv_w(ks[4], 128, 128), "bn3": bn(ks[5], 128),
        "fc_w": 0.1 * jax.random.normal(ks[6], (2, 128), jnp.float32),
        "fc_b": 0.01 * jax.random.normal(ks[7], (2,), jnp.float32),
    }


def prep_kernel_params(tp):
    """One-time constant fold: eval-mode BN scale into bf16 matmul weights."""
    def fold(conv_w, bn):
        scale = bn["gamma"] * jax.lax.rsqrt(bn["var"] + EPS)          # (Cout,)
        shift = bn["beta"] - bn["mean"] * scale
        w = (conv_w.T * scale[None, :]).astype(jnp.bfloat16)          # (Cin, Cout)
        return w, shift.reshape(1, -1).astype(jnp.float32)

    p = {}
    p["w1"], p["b1"] = fold(tp["conv1_w"], tp["bn1"])
    p["w2"], p["b2"] = fold(tp["conv2_w"], tp["bn2"])
    p["w3"], p["b3"] = fold(tp["conv3_w"], tp["bn3"])
    p["fc_w"] = tp["fc_w"].T                                          # (128, 2) f32
    p["fc_b"] = tp["fc_b"].reshape(1, 2)
    return p


def reference_forward(x_nchw, tp):
    hp = jax.lax.Precision.HIGHEST
    x = jnp.transpose(x_nchw, (0, 2, 3, 1)).astype(jnp.float32)       # (N, H, W, C)
    N, H, W, _ = x.shape
    h = x.reshape(N, H * W, -1)
    for cw, bn in ((tp["conv1_w"], tp["bn1"]),
                   (tp["conv2_w"], tp["bn2"]),
                   (tp["conv3_w"], tp["bn3"])):
        h = jnp.einsum("npc,dc->npd", h, cw, precision=hp)
        h = (h - bn["mean"]) * jax.lax.rsqrt(bn["var"] + EPS) * bn["gamma"] + bn["beta"]
        h = jnp.maximum(h, 0.0)
    pooled = jnp.mean(h, axis=1)
    return jnp.dot(pooled, tp["fc_w"].T, precision=hp) + tp["fc_b"]


if __name__ == "__main__":
    key = jax.random.PRNGKey(0)
    k_x, k_p = jax.random.split(key)
    # Channel count (256) is fixed by the module; small batch / spatial sizes.
    x = jax.random.normal(k_x, (2, 256, 16, 16), jnp.float32)         # NCHW like PyTorch
    torch_params = make_torch_params(k_p)
    kernel_params = prep_kernel_params(torch_params)

    out = jax.block_until_ready(netd1_forward(x, kernel_params))
    assert out.shape == (2, 2) and out.dtype == jnp.float32

    ref = reference_forward(x, torch_params)
    max_err = float(jnp.max(jnp.abs(out - ref)))
    assert max_err < 5e-2, f"max abs error {max_err}"
    print("KERNEL_OK")
</pallas_src>

<mosaic_0001>
module attributes {stable_mosaic.version = 11 : i64} {
  func.func @_netd1_kernel(%arg0: i32, %arg1: i32, %arg2: memref<1x256x256xf32, #tpu.memory_space<vmem>>, %arg3: memref<256x256xbf16, #tpu.memory_space<vmem>>, %arg4: memref<1x256xf32, #tpu.memory_space<vmem>>, %arg5: memref<256x128xbf16, #tpu.memory_space<vmem>>, %arg6: memref<1x128xf32, #tpu.memory_space<vmem>>, %arg7: memref<128x128xbf16, #tpu.memory_space<vmem>>, %arg8: memref<1x128xf32, #tpu.memory_space<vmem>>, %arg9: memref<1x1x128xf32, #tpu.memory_space<vmem>>) attributes {dimension_semantics = [#tpu.dimension_semantics<parallel>, #tpu.dimension_semantics<parallel>], iteration_bounds = array<i64: 2, 1>, scalar_prefetch = 0 : i64, scratch_operands = 0 : i64, tpu.core_type = #tpu.core_type<tc>, window_params = [{transform_indices = @transform_0, window_bounds = array<i64: 1, 256, 256>}, {pipeline_mode = #tpu.pipeline_mode<synchronous>, transform_indices = @transform_1, window_bounds = array<i64: 256, 256>}, {pipeline_mode = #tpu.pipeline_mode<synchronous>, transform_indices = @transform_2, window_bounds = array<i64: 1, 256>}, {pipeline_mode = #tpu.pipeline_mode<synchronous>, transform_indices = @transform_3, window_bounds = array<i64: 256, 128>}, {pipeline_mode = #tpu.pipeline_mode<synchronous>, transform_indices = @transform_4, window_bounds = array<i64: 1, 128>}, {pipeline_mode = #tpu.pipeline_mode<synchronous>, transform_indices = @transform_5, window_bounds = array<i64: 128, 128>}, {pipeline_mode = #tpu.pipeline_mode<synchronous>, transform_indices = @transform_6, window_bounds = array<i64: 1, 128>}, {transform_indices = @transform_7, window_bounds = array<i64: 1, 1, 128>}]} {
    %c0 = arith.constant 0 : index
    %c0_0 = arith.constant 0 : index
    %c0_1 = arith.constant 0 : index
    %0 = vector.load %arg2[%c0, %c0_0, %c0_1] : memref<1x256x256xf32, #tpu.memory_space<vmem>>, vector<1x256x256xf32>
    %1 = vector.shape_cast %0 : vector<1x256x256xf32> to vector<256x256xf32>
    %2 = tpu.transpose %1, [1, 0] : vector<256x256xf32> -> vector<256x256xf32>
    %3 = arith.truncf %2 : vector<256x256xf32> to vector<256x256xbf16>
    %c0_2 = arith.constant 0 : index
    %c0_3 = arith.constant 0 : index
    %4 = vector.load %arg3[%c0_2, %c0_3] : memref<256x256xbf16, #tpu.memory_space<vmem>>, vector<256x256xbf16>
    %cst = arith.constant dense<0.000000e+00> : vector<256x256xf32>
    %5 = tpu.matmul %3, %4, %cst {dimension_numbers = #tpu.dot_dimension_numbers<[1], [0], [0], [1], [0, 0, 1, 1], [], []>} : vector<256x256xbf16>, vector<256x256xbf16>, vector<256x256xf32> -> vector<256x256xf32>
    %c0_4 = arith.constant 0 : index
    %c0_5 = arith.constant 0 : index
    %6 = vector.load %arg4[%c0_4, %c0_5] : memref<1x256xf32, #tpu.memory_space<vmem>>, vector<1x256xf32>
    %7 = vector.broadcast %6 : vector<1x256xf32> to vector<256x256xf32>
    %8 = arith.addf %5, %7 : vector<256x256xf32>
    %cst_6 = arith.constant 0.000000e+00 : f32
    %9 = vector.broadcast %cst_6 : f32 to vector<256x256xf32>
    %10 = arith.maximumf %8, %9 : vector<256x256xf32>
    %11 = arith.truncf %10 : vector<256x256xf32> to vector<256x256xbf16>
    %c0_7 = arith.constant 0 : index
    %c0_8 = arith.constant 0 : index
    %12 = vector.load %arg5[%c0_7, %c0_8] : memref<256x128xbf16, #tpu.memory_space<vmem>>, vector<256x128xbf16>
    %cst_9 = arith.constant dense<0.000000e+00> : vector<256x128xf32>
    %13 = tpu.matmul %11, %12, %cst_9 {dimension_numbers = #tpu.dot_dimension_numbers<[1], [0], [0], [1], [0, 0, 1, 1], [], []>} : vector<256x256xbf16>, vector<256x128xbf16>, vector<256x128xf32> -> vector<256x128xf32>
    %c0_10 = arith.constant 0 : index
    %c0_11 = arith.constant 0 : index
    %14 = vector.load %arg6[%c0_10, %c0_11] : memref<1x128xf32, #tpu.memory_space<vmem>>, vector<1x128xf32>
    %15 = vector.broadcast %14 : vector<1x128xf32> to vector<256x128xf32>
    %16 = arith.addf %13, %15 : vector<256x128xf32>
    %cst_12 = arith.constant 0.000000e+00 : f32
    %17 = vector.broadcast %cst_12 : f32 to vector<256x128xf32>
    %18 = arith.maximumf %16, %17 : vector<256x128xf32>
    %19 = arith.truncf %18 : vector<256x128xf32> to vector<256x128xbf16>
    %c0_13 = arith.constant 0 : index
    %c0_14 = arith.constant 0 : index
    %20 = vector.load %arg7[%c0_13, %c0_14] : memref<128x128xbf16, #tpu.memory_space<vmem>>, vector<128x128xbf16>
    %cst_15 = arith.constant dense<0.000000e+00> : vector<256x128xf32>
    %21 = tpu.matmul %19, %20, %cst_15 {dimension_numbers = #tpu.dot_dimension_numbers<[1], [0], [0], [1], [0, 0, 1, 1], [], []>} : vector<256x128xbf16>, vector<128x128xbf16>, vector<256x128xf32> -> vector<256x128xf32>
    %c0_16 = arith.constant 0 : index
    %c0_17 = arith.constant 0 : index
    %22 = vector.load %arg8[%c0_16, %c0_17] : memref<1x128xf32, #tpu.memory_space<vmem>>, vector<1x128xf32>
    %23 = vector.broadcast %22 : vector<1x128xf32> to vector<256x128xf32>
    %24 = arith.addf %21, %23 : vector<256x128xf32>
    %cst_18 = arith.constant 0.000000e+00 : f32
    %25 = vector.broadcast %cst_18 : f32 to vector<256x128xf32>
    %26 = arith.maximumf %24, %25 : vector<256x128xf32>
    %cst_19 = arith.constant dense<0.000000e+00> : vector<128xf32>
    %27 = vector.multi_reduction <add>, %26, %cst_19 [0] : vector<256x128xf32> to vector<128xf32>
    %28 = vector.shape_cast %27 : vector<128xf32> to vector<1x128xf32>
    %c0_20 = arith.constant 0 : index
    %c0_21 = arith.constant 0 : index
    %c0_22 = arith.constant 0 : index
    %29 = vector.load %arg9[%c0_20, %c0_21, %c0_22] : memref<1x1x128xf32, #tpu.memory_space<vmem>>, vector<1x1x128xf32>
    %30 = vector.shape_cast %29 : vector<1x1x128xf32> to vector<1x128xf32>
    %31 = vector.shape_cast %28 : vector<1x128xf32> to vector<1x1x128xf32>
    tpu.vector_store %arg9[%c0_20, %c0_21, %c0_22], %31 {strides = array<i32>} : memref<1x1x128xf32, #tpu.memory_space<vmem>>, vector<1x1x128xf32>,
    return
  }
  func.func @transform_0(%arg0: i32, %arg1: i32) -> (i32, i32, i32) {
    %c0_i32 = arith.constant 0 : i32
    %c0_i32_0 = arith.constant 0 : i32
    return %arg0, %c0_i32, %arg1 : i32, i32, i32
  }
  func.func @transform_1(%arg0: i32, %arg1: i32) -> (i32, i32) {
    %c0_i32 = arith.constant 0 : i32
    %c0_i32_0 = arith.constant 0 : i32
    %c0_i32_1 = arith.constant 0 : i32
    return %c0_i32, %c0_i32_0 : i32, i32
  }
  func.func @transform_2(%arg0: i32, %arg1: i32) -> (i32, i32) {
    %c0_i32 = arith.constant 0 : i32
    %c0_i32_0 = arith.constant 0 : i32
    %c0_i32_1 = arith.constant 0 : i32
    return %c0_i32, %c0_i32_0 : i32, i32
  }
  func.func @transform_3(%arg0: i32, %arg1: i32) -> (i32, i32) {
    %c0_i32 = arith.constant 0 : i32
    %c0_i32_0 = arith.constant 0 : i32
    %c0_i32_1 = arith.constant 0 : i32
    return %c0_i32, %c0_i32_0 : i32, i32
  }
  func.func @transform_4(%arg0: i32, %arg1: i32) -> (i32, i32) {
    %c0_i32 = arith.constant 0 : i32
    %c0_i32_0 = arith.constant 0 : i32
    %c0_i32_1 = arith.constant 0 : i32
    return %c0_i32, %c0_i32_0 : i32, i32
  }
  func.func @transform_5(%arg0: i32, %arg1: i32) -> (i32, i32) {
    %c0_i32 = arith.constant 0 : i32
    %c0_i32_0 = arith.constant 0 : i32
    %c0_i32_1 = arith.constant 0 : i32
    return %c0_i32, %c0_i32_0 : i32, i32
  }
  func.func @transform_6(%arg0: i32, %arg1: i32) -> (i32, i32) {
    %c0_i32 = arith.constant 0 : i32
    %c0_i32_0 = arith.constant 0 : i32
    %c0_i32_1 = arith.constant 0 : i32
    return %c0_i32, %c0_i32_0 : i32, i32
  }
  func.func @transform_7(%arg0: i32, %arg1: i32) -> (i32, i32, i32) {
    %c0_i32 = arith.constant 0 : i32
    %c0_i32_0 = arith.constant 0 : i32
    return %arg0, %c0_i32, %arg1 : i32, i32, i32
  }
}

</mosaic_0001>

<llo_original>
// kernel: netd1_forward.1
$region0: #{netd1_forward.1}
  #allocation0 [shape = 'u32[]', space=smem, size = 0x4, offset = 0x4, fixed_abs, tag = 'smem constant byte address 0x4 - core index']
  #allocation1 [shape = 'u32[144,128]{1,0:T(1,128)}', space=vmem, size = 0x12000, scoped, tag = 'internal scratch']
  %s0 = inlined_call_operand.vmem [shape: f32[2,256,256], index: 0, kind: input, shape index: {}]
  %s1 = inlined_call_operand.vmem [shape: bf16[256,256], index: 1, kind: input, shape index: {}]
  %s2 = inlined_call_operand.vmem [shape: f32[1,256], index: 2, kind: input, shape index: {}]
  %s3 = inlined_call_operand.vmem [shape: bf16[256,128], index: 3, kind: input, shape index: {}]
  %s4 = inlined_call_operand.vmem [shape: f32[1,128], index: 4, kind: input, shape index: {}]
  %s5 = inlined_call_operand.vmem [shape: bf16[128,128], index: 5, kind: input, shape index: {}]
  %s6 = inlined_call_operand.vmem [shape: f32[1,128], index: 6, kind: input, shape index: {}]
  %s7 = inlined_call_operand.vmem [shape: f32[2,1,128], index: 7, kind: output, shape index: {}]
  %s8 = sld [smem:[#allocation0]]
  $region61: #{netd1_forward.1} parent=0
    _
  %s10 = ssub.s32 1, %s8
  %s11 = scalar_select 0, %s10, %s8
  loop: start=0, step=1, limit=4
  $region2: #{netd1_forward.1} parent=0 // loop_pre_header
    _
  $region3: #{netd1_forward.1} parent=0 // loop_header
    %s13 = sphi 0, %s17
    %p14 = scmp.ge.s32.totalorder %s13, 4
    %s20 = sphi 0, %s32
    %s21 = sphi 0, %s28
    %s22 = sphi 0, %s20
    %s23 = sphi 0, %s21
    %s24 = sphi 0, %s22
    %s25 = sphi 0, %s23
    %s37 = sphi 0, %s39
    %s40 = sphi 0, %s37
    %s41 = sphi 0, %s40
    %s57 = sphi 0, %s41
    %s61 = sphi 0, %s61
    %s63 = sphi 0, %s61
    %s64 = sphi 0, %s63
    %s78 = sphi 0, %s64
    %s82 = sphi 0, %s82
    %s84 = sphi 0, %s82
    %s85 = sphi 0, %s84
    %s99 = sphi 0, %s85
    %s103 = sphi 0, %s103
    %s105 = sphi 0, %s103
    %s106 = sphi 0, %s105
    %s120 = sphi 0, %s106
    %s124 = sphi 0, %s124
    %s126 = sphi 0, %s124
    %s127 = sphi 0, %s126
    %s141 = sphi 0, %s127
    %s145 = sphi 0, %s145
    %s147 = sphi 0, %s145
    %s148 = sphi 0, %s147
    %s162 = sphi 0, %s148
    %s166 = sphi 0, %s166
    %s168 = sphi 0, %s166
    %s169 = sphi 0, %s168
    %s183 = sphi 0, %s169
    %s191 = sphi 0, %s193
    %s194 = sphi 0, %s191
    %s195 = sphi 0, %s194
    %s211 = sphi 0, %s195
  $region4: #{netd1_forward.1} parent=0 // loop_header_branch
    %16 = sbr.rel (%p14) target = $region8
  $region5: #{netd1_forward.1} parent=0 // loop_body
    %s18 = ssub.s32 %s13, 1
    %s19 = ssub.s32 %s13, 2
    %s26 = sadd.s32 1, %s21
    %p27 = scmp.ge.s32.totalorder %s26, 1
    %s28 = scalar_select %p27, 0, %s26
    %s29 = sadd.s32 1, %s20
    %s30 = scalar_select %p27, %s29, %s20
    %p31 = scmp.ge.s32.totalorder %s30, 2
    %s32 = scalar_select %p31, 0, %s30
    %s33 = ssub.s32 %s20, %s32
    %s34 = ssub.s32 %s21, %s28
    %s35 = sor.u32 %s33, %s34
    %p36 = scmp.eq.s32.totalorder %s35, 0
    %s38 = sadd.s32 %s37, 1
    %s39 = scalar_select %p36, %s37, %s38
    %p42 = pneg %p36
    %p43 = scmp.eq.s32.totalorder %s13, 1
    %p44 = por %p42, %p43
    %p45 = scmp.ne.s32.totalorder %s37, %s40
    %p46 = scmp.eq.s32.totalorder %s13, 0
    %p47 = por %p45, %p46
    %p48 = scmp.ne.s32.totalorder %s37, %s40
    %p49 = scmp.eq.s32.totalorder %s18, 1
    %p50 = por %p48, %p49
    %p51 = scmp.ne.s32.totalorder %s40, %s41
    %p52 = scmp.eq.s32.totalorder %s18, 0
    %p53 = por %p51, %p52
    %p54 = scmp.ne.s32.totalorder %s40, %s41
    %p55 = scmp.eq.s32.totalorder %s19, 1
    %p56 = por %p54, %p55
    %p58 = scmp.ne.s32.totalorder %s41, %s57
    %p59 = scmp.eq.s32.totalorder %s19, 0
    %p60 = por %p58, %p59
    %s62 = sadd.s32 %s61, 1
    %p65 = scmp.eq.s32.totalorder %s13, 1
    %p66 = scmp.ne.s32.totalorder %s61, %s63
    %p67 = scmp.eq.s32.totalorder %s13, 0
    %p68 = por %p66, %p67
    %p69 = scmp.ne.s32.totalorder %s61, %s63
    %p70 = scmp.eq.s32.totalorder %s18, 1
    %p71 = por %p69, %p70
    %p72 = scmp.ne.s32.totalorder %s63, %s64
    %p73 = scmp.eq.s32.totalorder %s18, 0
    %p74 = por %p72, %p73
    %p75 = scmp.ne.s32.totalorder %s63, %s64
    %p76 = scmp.eq.s32.totalorder %s19, 1
    %p77 = por %p75, %p76
    %p79 = scmp.ne.s32.totalorder %s64, %s78
    %p80 = scmp.eq.s32.totalorder %s19, 0
    %p81 = por %p79, %p80
    %s83 = sadd.s32 %s82, 1
    %p86 = scmp.eq.s32.totalorder %s13, 1
    %p87 = scmp.ne.s32.totalorder %s82, %s84
    %p88 = scmp.eq.s32.totalorder %s13, 0
    %p89 = por %p87, %p88
    %p90 = scmp.ne.s32.totalorder %s82, %s84
    %p91 = scmp.eq.s32.totalorder %s18, 1
    %p92 = por %p90, %p91
    %p93 = scmp.ne.s32.totalorder %s84, %s85
    %p94 = scmp.eq.s32.totalorder %s18, 0
    %p95 = por %p93, %p94
    %p96 = scmp.ne.s32.totalorder %s84, %s85
    %p97 = scmp.eq.s32.totalorder %s19, 1
    %p98 = por %p96, %p97
    %p100 = scmp.ne.s32.totalorder %s85, %s99
    %p101 = scmp.eq.s32.totalorder %s19, 0
    %p102 = por %p100, %p101
    %s104 = sadd.s32 %s103, 1
    %p107 = scmp.eq.s32.totalorder %s13, 1
    %p108 = scmp.ne.s32.totalorder %s103, %s105
    %p109 = scmp.eq.s32.totalorder %s13, 0
    %p110 = por %p108, %p109
    %p111 = scmp.ne.s32.totalorder %s103, %s105
    %p112 = scmp.eq.s32.totalorder %s18, 1
    %p113 = por %p111, %p112
    %p114 = scmp.ne.s32.totalorder %s105, %s106
    %p115 = scmp.eq.s32.totalorder %s18, 0
    %p116 = por %p114, %p115
    %p117 = scmp.ne.s32.totalorder %s105, %s106
    %p118 = scmp.eq.s32.totalorder %s19, 1
    %p119 = por %p117, %p118
    %p121 = scmp.ne.s32.totalorder %s106, %s120
    %p122 = scmp.eq.s32.totalorder %s19, 0
    %p123 = por %p121, %p122
    %s125 = sadd.s32 %s124, 1
    %p128 = scmp.eq.s32.totalorder %s13, 1
    %p129 = scmp.ne.s32.totalorder %s124, %s126
    %p130 = scmp.eq.s32.totalorder %s13, 0
    %p131 = por %p129, %p130
    %p132 = scmp.ne.s32.totalorder %s124, %s126
    %p133 = scmp.eq.s32.totalorder %s18, 1
    %p134 = por %p132, %p133
    %p135 = scmp.ne.s32.totalorder %s126, %s127
    %p136 = scmp.eq.s32.totalorder %s18, 0
    %p137 = por %p135, %p136
    %p138 = scmp.ne.s32.totalorder %s126, %s127
    %p139 = scmp.eq.s32.totalorder %s19, 1
    %p140 = por %p138, %p139
    %p142 = scmp.ne.s32.totalorder %s127, %s141
    %p143 = scmp.eq.s32.totalorder %s19, 0
    %p144 = por %p142, %p143
    %s146 = sadd.s32 %s145, 1
    %p149 = scmp.eq.s32.totalorder %s13, 1
    %p150 = scmp.ne.s32.totalorder %s145, %s147
    %p151 = scmp.eq.s32.totalorder %s13, 0
    %p152 = por %p150, %p151
    %p153 = scmp.ne.s32.totalorder %s145, %s147
    %p154 = scmp.eq.s32.totalorder %s18, 1
    %p155 = por %p153, %p154
    %p156 = scmp.ne.s32.totalorder %s147, %s148
    %p157 = scmp.eq.s32.totalorder %s18, 0
    %p158 = por %p156, %p157
    %p159 = scmp.ne.s32.totalorder %s147, %s148
    %p160 = scmp.eq.s32.totalorder %s19, 1
    %p161 = por %p159, %p160
    %p163 = scmp.ne.s32.totalorder %s148, %s162
    %p164 = scmp.eq.s32.totalorder %s19, 0
    %p165 = por %p163, %p164
    %s167 = sadd.s32 %s166, 1
    %p170 = scmp.eq.s32.totalorder %s13, 1
    %p171 = scmp.ne.s32.totalorder %s166, %s168
    %p172 = scmp.eq.s32.totalorder %s13, 0
    %p173 = por %p171, %p172
    %p174 = scmp.ne.s32.totalorder %s166, %s168
    %p175 = scmp.eq.s32.totalorder %s18, 1
    %p176 = por %p174, %p175
    %p177 = scmp.ne.s32.totalorder %s168, %s169
    %p178 = scmp.eq.s32.totalorder %s18, 0
    %p179 = por %p177, %p178
    %p180 = scmp.ne.s32.totalorder %s168, %s169
    %p181 = scmp.eq.s32.totalorder %s19, 1
    %p182 = por %p180, %p181
    %p184 = scmp.ne.s32.totalorder %s169, %s183
    %p185 = scmp.eq.s32.totalorder %s19, 0
    %p186 = por %p184, %p185
    %s187 = ssub.s32 %s20, %s32
    %s188 = ssub.s32 %s21, %s28
    %s189 = sor.u32 %s187, %s188
    %p190 = scmp.eq.s32.totalorder %s189, 0
    %s192 = sadd.s32 %s191, 1
    %s193 = scalar_select %p190, %s191, %s192
    %p196 = pneg %p190
    %p197 = scmp.eq.s32.totalorder %s13, 1
    %p198 = por %p196, %p197
    %p199 = scmp.ne.s32.totalorder %s191, %s194
    %p200 = scmp.eq.s32.totalorder %s13, 0
    %p201 = por %p199, %p200
    %p202 = scmp.ne.s32.totalorder %s191, %s194
    %p203 = scmp.eq.s32.totalorder %s18, 1
    %p204 = por %p202, %p203
    %p205 = scmp.ne.s32.totalorder %s194, %s195
    %p206 = scmp.eq.s32.totalorder %s18, 0
    %p207 = por %p205, %p206
    %p208 = scmp.ne.s32.totalorder %s194, %s195
    %p209 = scmp.eq.s32.totalorder %s19, 1
    %p210 = por %p208, %p209
    %p212 = scmp.ne.s32.totalorder %s195, %s211
    %p213 = scmp.eq.s32.totalorder %s19, 0
    %p214 = por %p212, %p213
    %p215 = scmp.le.s32.totalorder 1, %s13
    %p216 = scmp.lt.s32.totalorder %s13, 3
    %p217 = pnand %p215, %p216
    %p218 = pneg %p217
    // Predicated region
    $region9: #{netd1_forward.1} parent=5 // pred_check
      _
    $region10: #{netd1_forward.1} parent=5 // pred_check_branch
      %220 = sbr.rel (%p217) target = $region12
    $region11: #{netd1_forward.1} parent=5 // pred_region
      %s221 = ssub.s32 %s13, 1
      // Predicated region
      $region13: #{netd1_forward.1} parent=11 // pred_check
        %p222 = pneg %p74
      $region14: #{netd1_forward.1} parent=11 // pred_check_branch
        %224 = sbr.rel (%p222) target = $region16
      $region15: #{netd1_forward.1} parent=11 // pred_region
        _
      $region16: #{netd1_forward.1} parent=11 // pred_fallthru
        _
      // Predicated region
      $region17: #{netd1_forward.1} parent=11 // pred_check
        %p225 = pneg %p95
      $region18: #{netd1_forward.1} parent=11 // pred_check_branch
        %227 = sbr.rel (%p225) target = $region20
      $region19: #{netd1_forward.1} parent=11 // pred_region
        _
      $region20: #{netd1_forward.1} parent=11 // pred_fallthru
        _
      // Predicated region
      $region21: #{netd1_forward.1} parent=11 // pred_check
        %p228 = pneg %p116
      $region22: #{netd1_forward.1} parent=11 // pred_check_branch
        %230 = sbr.rel (%p228) target = $region24
      $region23: #{netd1_forward.1} parent=11 // pred_region
        _
      $region24: #{netd1_forward.1} parent=11 // pred_fallthru
        _
      // Predicated region
      $region25: #{netd1_forward.1} parent=11 // pred_check
        %p231 = pneg %p137
      $region26: #{netd1_forward.1} parent=11 // pred_check_branch
        %233 = sbr.rel (%p231) target = $region28
      $region27: #{netd1_forward.1} parent=11 // pred_region
        _
      $region28: #{netd1_forward.1} parent=11 // pred_fallthru
        _
      // Predicated region
      $region29: #{netd1_forward.1} parent=11 // pred_check
        %p234 = pneg %p158
      $region30: #{netd1_forward.1} parent=11 // pred_check_branch
        %236 = sbr.rel (%p234) target = $region32
      $region31: #{netd1_forward.1} parent=11 // pred_region
        _
      $region32: #{netd1_forward.1} parent=11 // pred_fallthru
        _
      // Predicated region
      $region33: #{netd1_forward.1} parent=11 // pred_check
        %p237 = pneg %p179
      $region34: #{netd1_forward.1} parent=11 // pred_check_branch
        %239 = sbr.rel (%p237) target = $region36
      $region35: #{netd1_forward.1} parent=11 // pred_region
        _
      $region36: #{netd1_forward.1} parent=11 // pred_fallthru
        _
    $region12: #{netd1_forward.1} parent=5 // pred_fallthru
      _
    %p240 = scmp.lt.s32.totalorder %s13, 2
    // Predicated region
    $region37: #{netd1_forward.1} parent=5 // pred_check
      %p241 = pneg %p240
    $region38: #{netd1_forward.1} parent=5 // pred_check_branch
      %243 = sbr.rel (%p241) target = $region40
    $region39: #{netd1_forward.1} parent=5 // pred_region
      // Predicated region
      $region41: #{netd1_forward.1} parent=39 // pred_check
        %p244 = pneg %p47
      $region42: #{netd1_forward.1} parent=39 // pred_check_branch
        %246 = sbr.rel (%p244) target = $region44
      $region43: #{netd1_forward.1} parent=39 // pred_region
        %s247 = smul.u32 2, %s21
        %p248 = scmp.lt.s32.totalorder %s20, 1
        %s249 = scalar_select %p248, %s20, 1
        %p250 = scmp.lt.s32.totalorder %s247, 1
        %s251 = scalar_select %p250, %s247, 1
        %s252 = smul.addr %s249, 64
        %s253 = sadd.s32 %s251, %s252
        %s254 = smul.addr %s253, 8
        %s255 = scalar_lea.vmem %s0, %s254
        %s256 = smul.u32 2, %s21
      $region44: #{netd1_forward.1} parent=39 // pred_fallthru
        _
    $region40: #{netd1_forward.1} parent=5 // pred_fallthru
      _
    %p257 = scmp.le.s32.totalorder 1, %s13
    %p258 = scmp.lt.s32.totalorder %s13, 3
    %p259 = pnand %p257, %p258
    %p260 = pneg %p259
    // Predicated region
    $region45: #{netd1_forward.1} parent=5 // pred_check
      _
    $region46: #{netd1_forward.1} parent=5 // pred_check_branch
      %262 = sbr.rel (%p259) target = $region48
    $region47: #{netd1_forward.1} parent=5 // pred_region
      %s263 = ssub.s32 %s13, 1
      %s264 = smul.u32 2, %s23
      %p265 = scmp.lt.s32.totalorder %s22, 1
      %s266 = scalar_select %p265, %s22, 1
      %p267 = scmp.lt.s32.totalorder %s264, 1
      %s268 = scalar_select %p267, %s264, 1
      %s269 = smul.addr %s266, 64
      %s270 = sadd.s32 %s268, %s269
      %s271 = smul.addr %s270, 8
      %s272 = scalar_lea.vmem %s0, %s271
      %p273 = pneg %p53
      %p274 = pneg %p50
      %p275 = pneg %p74
      %p276 = pneg %p71
      %p277 = pneg %p95
      %p278 = pneg %p92
      %p279 = pneg %p116
      %p280 = pneg %p113
      %p281 = pneg %p137
      %p282 = pneg %p134
      %p283 = pneg %p158
      %p284 = pneg %p155
      %p285 = pneg %p179
      %p286 = pneg %p176
      %p287 = pneg %p207
      %p288 = pneg %p204
      %p289 = scmp.lt.s32.totalorder %s22, 1
      %s290 = scalar_select %p289, %s22, 1
      %p291 = scmp.lt.s32.totalorder %s23, 0
      %s292 = scalar_select %p291, %s23, 0
      %s293 = sadd.s32 %s292, %s290
      %s294 = scalar_lea.vmem %s7, %s293
      %s295 = smul.u32 2, %s23
      %p296 = scmp.lt.s32.totalorder %s22, 1
      %s297 = scalar_select %p296, %s22, 1
      %p298 = scmp.lt.s32.totalorder %s295, 1
      %s299 = scalar_select %p298, %s295, 1
      %s300 = smul.addr %s297, 64
      %s301 = sadd.s32 %s299, %s300
      %s302 = smul.addr %s301, 8
      %s303 = scalar_lea.vmem %s0, %s302
      %s304 = smul.u32 2, %s23
      %p305 = scmp.lt.s32.totalorder %s22, 1
      %s306 = scalar_select %p305, %s22, 1
      %p307 = scmp.lt.s32.totalorder %s23, 0
      %s308 = scalar_select %p307, %s23, 0
      %s309 = sadd.s32 %s308, %s306
      %s310 = scalar_lea.vmem %s7, %s309
      %v312 = vld [vmem:[%s303] sm:$0xff]
      %v313 = vld [vmem:[%s303 + $0x8] sm:$0xff]
      %v314 = vld [vmem:[%s303 + $0x10] sm:$0xff]
      %v315 = vld [vmem:[%s303 + $0x18] sm:$0xff]
      %v316 = vld [vmem:[%s303 + $0x20] sm:$0xff]
      %v317 = vld [vmem:[%s303 + $0x28] sm:$0xff]
      %v318 = vld [vmem:[%s303 + $0x30] sm:$0xff]
      %v319 = vld [vmem:[%s303 + $0x38] sm:$0xff]
      %v320 = vld [vmem:[%s303 + $0x40] sm:$0xff]
      %v321 = vld [vmem:[%s303 + $0x48] sm:$0xff]
      %v322 = vld [vmem:[%s303 + $0x50] sm:$0xff]
      %v323 = vld [vmem:[%s303 + $0x58] sm:$0xff]
      %v324 = vld [vmem:[%s303 + $0x60] sm:$0xff]
      %v325 = vld [vmem:[%s303 + $0x68] sm:$0xff]
      %v326 = vld [vmem:[%s303 + $0x70] sm:$0xff]
      %v327 = vld [vmem:[%s303 + $0x78] sm:$0xff]
      %v328 = vld [vmem:[%s303 + $0x80] sm:$0xff]
      %v329 = vld [vmem:[%s303 + $0x88] sm:$0xff]
      %v330 = vld [vmem:[%s303 + $0x90] sm:$0xff]
      %v331 = vld [vmem:[%s303 + $0x98] sm:$0xff]
      %v332 = vld [vmem:[%s303 + $0xa0] sm:$0xff]
      %v333 = vld [vmem:[%s303 + $0xa8] sm:$0xff]
      %v334 = vld [vmem:[%s303 + $0xb0] sm:$0xff]
      %v335 = vld [vmem:[%s303 + $0xb8] sm:$0xff]
      %v336 = vld [vmem:[%s303 + $0xc0] sm:$0xff]
      %v337 = vld [vmem:[%s303 + $0xc8] sm:$0xff]
      %v338 = vld [vmem:[%s303 + $0xd0] sm:$0xff]
      %v339 = vld [vmem:[%s303 + $0xd8] sm:$0xff]
      %v340 = vld [vmem:[%s303 + $0xe0] sm:$0xff]
      %v341 = vld [vmem:[%s303 + $0xe8] sm:$0xff]
      %v342 = vld [vmem:[%s303 + $0xf0] sm:$0xff]
      %v343 = vld [vmem:[%s303 + $0xf8] sm:$0xff]
      %v344 = vld [vmem:[%s303 + $0x100] sm:$0xff]
      %v345 = vld [vmem:[%s303 + $0x108] sm:$0xff]
      %v346 = vld [vmem:[%s303 + $0x110] sm:$0xff]
      %v347 = vld [vmem:[%s303 + $0x118] sm:$0xff]
      %v348 = vld [vmem:[%s303 + $0x120] sm:$0xff]
      %v349 = vld [vmem:[%s303 + $0x128] sm:$0xff]
      %v350 = vld [vmem:[%s303 + $0x130] sm:$0xff]
      %v351 = vld [vmem:[%s303 + $0x138] sm:$0xff]
      %v352 = vld [vmem:[%s303 + $0x140] sm:$0xff]
      %v353 = vld [vmem:[%s303 + $0x148] sm:$0xff]
      %v354 = vld [vmem:[%s303 + $0x150] sm:$0xff]
      %v355 = vld [vmem:[%s303 + $0x158] sm:$0xff]
      %v356 = vld [vmem:[%s303 + $0x160] sm:$0xff]
      %v357 = vld [vmem:[%s303 + $0x168] sm:$0xff]
      %v358 = vld [vmem:[%s303 + $0x170] sm:$0xff]
      %v359 = vld [vmem:[%s303 + $0x178] sm:$0xff]
      %v360 = vld [vmem:[%s303 + $0x180] sm:$0xff]
      %v361 = vld [vmem:[%s303 + $0x188] sm:$0xff]
      %v362 = vld [vmem:[%s303 + $0x190] sm:$0xff]
      %v363 = vld [vmem:[%s303 + $0x198] sm:$0xff]
      %v364 = vld [vmem:[%s303 + $0x1a0] sm:$0xff]
      %v365 = vld [vmem:[%s303 + $0x1a8] sm:$0xff]
      %v366 = vld [vmem:[%s303 + $0x1b0] sm:$0xff]
      %v367 = vld [vmem:[%s303 + $0x1b8] sm:$0xff]
      %v368 = vld [vmem:[%s303 + $0x1c0] sm:$0xff]
      %v369 = vld [vmem:[%s303 + $0x1c8] sm:$0xff]
      %v370 = vld [vmem:[%s303 + $0x1d0] sm:$0xff]
      %v371 = vld [vmem:[%s303 + $0x1d8] sm:$0xff]
      %v372 = vld [vmem:[%s303 + $0x1e0] sm:$0xff]
      %v373 = vld [vmem:[%s303 + $0x1e8] sm:$0xff]
      %v374 = vld [vmem:[%s303 + $0x1f0] sm:$0xff]
      %v375 = vld [vmem:[%s303 + $0x1f8] sm:$0xff]
      %376 = vxpose.xlu0.b32.start [1/16] %v312, 128
      %377 = vxpose.xlu0.b32.cont [2/16] %v314, 128
      %378 = vxpose.xlu0.b32.cont [3/16] %v316, 128
      %379 = vxpose.xlu0.b32.cont [4/16] %v318, 128
      %380 = vxpose.xlu0.b32.cont [5/16] %v320, 128
      %381 = vxpose.xlu0.b32.cont [6/16] %v322, 128
      %382 = vxpose.xlu0.b32.cont [7/16] %v324, 128
      %383 = vxpose.xlu0.b32.cont [8/16] %v326, 128
      %384 = vxpose.xlu0.b32.cont [9/16] %v328, 128
      %385 = vxpose.xlu0.b32.cont [10/16] %v330, 128
      %386 = vxpose.xlu0.b32.cont [11/16] %v332, 128
      %387 = vxpose.xlu0.b32.cont [12/16] %v334, 128
      %388 = vxpose.xlu0.b32.cont [13/16] %v336, 128
      %389 = vxpose.xlu0.b32.cont [14/16] %v338, 128
      %390 = vxpose.xlu0.b32.cont [15/16] %v340, 128
      %391 = vxpose.xlu0.b32.end [16/16] %v342, 128
      %v392 = vpop.trf.xlu0
      %v393 = vpop.trf.xlu0
      %v394 = vpop.trf.xlu0
      %v395 = vpop.trf.xlu0
      %v396 = vpop.trf.xlu0
      %v397 = vpop.trf.xlu0
      %v398 = vpop.trf.xlu0
      %v399 = vpop.trf.xlu0
      %v400 = vpop.trf.xlu0
      %v401 = vpop.trf.xlu0
      %v402 = vpop.trf.xlu0
      %v403 = vpop.trf.xlu0
      %v404 = vpop.trf.xlu0
      %v405 = vpop.trf.xlu0
      %v406 = vpop.trf.xlu0
      %v407 = vpop.trf.xlu0
      %408 = vxpose.xlu0.b32.start [1/16] %v313, 128
      %409 = vxpose.xlu0.b32.cont [2/16] %v315, 128
      %410 = vxpose.xlu0.b32.cont [3/16] %v317, 128
      %411 = vxpose.xlu0.b32.cont [4/16] %v319, 128
      %412 = vxpose.xlu0.b32.cont [5/16] %v321, 128
      %413 = vxpose.xlu0.b32.cont [6/16] %v323, 128
      %414 = vxpose.xlu0.b32.cont [7/16] %v325, 128
      %415 = vxpose.xlu0.b32.cont [8/16] %v327, 128
      %416 = vxpose.xlu0.b32.cont [9/16] %v329, 128
      %417 = vxpose.xlu0.b32.cont [10/16] %v331, 128
      %418 = vxpose.xlu0.b32.cont [11/16] %v333, 128
      %419 = vxpose.xlu0.b32.cont [12/16] %v335, 128
      %420 = vxpose.xlu0.b32.cont [13/16] %v337, 128
      %421 = vxpose.xlu0.b32.cont [14/16] %v339, 128
      %422 = vxpose.xlu0.b32.cont [15/16] %v341, 128
      %423 = vxpose.xlu0.b32.end [16/16] %v343, 128
      %v424 = vpop.trf.xlu0
      %v425 = vpop.trf.xlu0
      %v426 = vpop.trf.xlu0
      %v427 = vpop.trf.xlu0
      %v428 = vpop.trf.xlu0
      %v429 = vpop.trf.xlu0
      %v430 = vpop.trf.xlu0
      %v431 = vpop.trf.xlu0
      %v432 = vpop.trf.xlu0
      %v433 = vpop.trf.xlu0
      %v434 = vpop.trf.xlu0
      %v435 = vpop.trf.xlu0
      %v436 = vpop.trf.xlu0
      %v437 = vpop.trf.xlu0
      %v438 = vpop.trf.xlu0
      %v439 = vpop.trf.xlu0
      %440 = vxpose.xlu0.b32.start [1/16] %v344, 128
      %441 = vxpose.xlu0.b32.cont [2/16] %v346, 128
      %442 = vxpose.xlu0.b32.cont [3/16] %v348, 128
      %443 = vxpose.xlu0.b32.cont [4/16] %v350, 128
      %444 = vxpose.xlu0.b32.cont [5/16] %v352, 128
      %445 = vxpose.xlu0.b32.cont [6/16] %v354, 128
      %446 = vxpose.xlu0.b32.cont [7/16] %v356, 128
      %447 = vxpose.xlu0.b32.cont [8/16] %v358, 128
      %448 = vxpose.xlu0.b32.cont [9/16] %v360, 128
      %449 = vxpose.xlu0.b32.cont [10/16] %v362, 128
      %450 = vxpose.xlu0.b32.cont [11/16] %v364, 128
      %451 = vxpose.xlu0.b32.cont [12/16] %v366, 128
      %452 = vxpose.xlu0.b32.cont [13/16] %v368, 128
      %453 = vxpose.xlu0.b32.cont [14/16] %v370, 128
      %454 = vxpose.xlu0.b32.cont [15/16] %v372, 128
      %455 = vxpose.xlu0.b32.end [16/16] %v374, 128
      %v456 = vpop.trf.xlu0
      %v457 = vpop.trf.xlu0
      %v458 = vpop.trf.xlu0
      %v459 = vpop.trf.xlu0
      %v460 = vpop.trf.xlu0
      %v461 = vpop.trf.xlu0
      %v462 = vpop.trf.xlu0
      %v463 = vpop.trf.xlu0
      %v464 = vpop.trf.xlu0
      %v465 = vpop.trf.xlu0
      %v466 = vpop.trf.xlu0
      %v467 = vpop.trf.xlu0
      %v468 = vpop.trf.xlu0
      %v469 = vpop.trf.xlu0
      %v470 = vpop.trf.xlu0
      %v471 = vpop.trf.xlu0
      %472 = vxpose.xlu0.b32.start [1/16] %v345, 128
      %473 = vxpose.xlu0.b32.cont [2/16] %v347, 128
      %474 = vxpose.xlu0.b32.cont [3/16] %v349, 128
      %475 = vxpose.xlu0.b32.cont [4/16] %v351, 128
      %476 = vxpose.xlu0.b32.cont [5/16] %v353, 128
      %477 = vxpose.xlu0.b32.cont [6/16] %v355, 128
      %478 = vxpose.xlu0.b32.cont [7/16] %v357, 128
      %479 = vxpose.xlu0.b32.cont [8/16] %v359, 128
      %480 = vxpose.xlu0.b32.cont [9/16] %v361, 128
      %481 = vxpose.xlu0.b32.cont [10/16] %v363, 128
      %482 = vxpose.xlu0.b32.cont [11/16] %v365, 128
      %483 = vxpose.xlu0.b32.cont [12/16] %v367, 128
      %484 = vxpose.xlu0.b32.cont [13/16] %v369, 128
      %485 = vxpose.xlu0.b32.cont [14/16] %v371, 128
      %486 = vxpose.xlu0.b32.cont [15/16] %v373, 128
      %487 = vxpose.xlu0.b32.end [16/16] %v375, 128
      %v488 = vpop.trf.xlu0
      %v489 = vpop.trf.xlu0
      %v490 = vpop.trf.xlu0
      %v491 = vpop.trf.xlu0
      %v492 = vpop.trf.xlu0
      %v493 = vpop.trf.xlu0
      %v494 = vpop.trf.xlu0
      %v495 = vpop.trf.xlu0
      %v496 = vpop.trf.xlu0
      %v497 = vpop.trf.xlu0
      %v498 = vpop.trf.xlu0
      %v499 = vpop.trf.xlu0
      %v500 = vpop.trf.xlu0
      %v501 = vpop.trf.xlu0
      %v502 = vpop.trf.xlu0
      %v503 = vpop.trf.xlu0
      %v504 = vpack.c.bf16 %v393, %v392
      %v505 = vpack.c.bf16 %v457, %v456
      %v506 = vpack.c.bf16 %v395, %v394
      %v507 = vpack.c.bf16 %v459, %v458
      %v508 = vpack.c.bf16 %v397, %v396
      %v509 = vpack.c.bf16 %v461, %v460
      %v510 = vpack.c.bf16 %v399, %v398
      %v511 = vpack.c.bf16 %v463, %v462
      %v512 = vpack.c.bf16 %v401, %v400
      %v513 = vpack.c.bf16 %v465, %v464
      %v514 = vpack.c.bf16 %v403, %v402
      %v515 = vpack.c.bf16 %v467, %v466
      %v516 = vpack.c.bf16 %v405, %v404
      %v517 = vpack.c.bf16 %v469, %v468
      %v518 = vpack.c.bf16 %v407, %v406
      %v519 = vpack.c.bf16 %v471, %v470
      %v520 = vpack.c.bf16 %v425, %v424
      %v521 = vpack.c.bf16 %v489, %v488
      %v522 = vpack.c.bf16 %v427, %v426
      %v523 = vpack.c.bf16 %v491, %v490
      %v524 = vpack.c.bf16 %v429, %v428
      %v525 = vpack.c.bf16 %v493, %v492
      %v526 = vpack.c.bf16 %v431, %v430
      %v527 = vpack.c.bf16 %v495, %v494
      %v528 = vpack.c.bf16 %v433, %v432
      %v529 = vpack.c.bf16 %v497, %v496
      %v530 = vpack.c.bf16 %v435, %v434
      %v531 = vpack.c.bf16 %v499, %v498
      %v532 = vpack.c.bf16 %v437, %v436
      %v533 = vpack.c.bf16 %v501, %v500
      %v534 = vpack.c.bf16 %v439, %v438
      %v535 = vpack.c.bf16 %v503, %v502
      %v536 = vld [vmem:[%s1] sm:$0xff]
      %v537 = vld [vmem:[%s1 + $0x8] sm:$0xff]
      %v538 = vld [vmem:[%s1 + $0x10] sm:$0xff]
      %v539 = vld [vmem:[%s1 + $0x18] sm:$0xff]
      %v540 = vld [vmem:[%s1 + $0x20] sm:$0xff]
      %v541 = vld [vmem:[%s1 + $0x28] sm:$0xff]
      %v542 = vld [vmem:[%s1 + $0x30] sm:$0xff]
      %v543 = vld [vmem:[%s1 + $0x38] sm:$0xff]
      %v544 = vld [vmem:[%s1 + $0x40] sm:$0xff]
      %v545 = vld [vmem:[%s1 + $0x48] sm:$0xff]
      %v546 = vld [vmem:[%s1 + $0x50] sm:$0xff]
      %v547 = vld [vmem:[%s1 + $0x58] sm:$0xff]
      %v548 = vld [vmem:[%s1 + $0x60] sm:$0xff]
      %v549 = vld [vmem:[%s1 + $0x68] sm:$0xff]
      %v550 = vld [vmem:[%s1 + $0x70] sm:$0xff]
      %v551 = vld [vmem:[%s1 + $0x78] sm:$0xff]
      %v552 = vld [vmem:[%s1 + $0x80] sm:$0xff]
      %v553 = vld [vmem:[%s1 + $0x88] sm:$0xff]
      %v554 = vld [vmem:[%s1 + $0x90] sm:$0xff]
      %v555 = vld [vmem:[%s1 + $0x98] sm:$0xff]
      %v556 = vld [vmem:[%s1 + $0xa0] sm:$0xff]
      %v557 = vld [vmem:[%s1 + $0xa8] sm:$0xff]
      %v558 = vld [vmem:[%s1 + $0xb0] sm:$0xff]
      %v559 = vld [vmem:[%s1 + $0xb8] sm:$0xff]
      %v560 = vld [vmem:[%s1 + $0xc0] sm:$0xff]
      %v561 = vld [vmem:[%s1 + $0xc8] sm:$0xff]
      %v562 = vld [vmem:[%s1 + $0xd0] sm:$0xff]
      %v563 = vld [vmem:[%s1 + $0xd8] sm:$0xff]
      %v564 = vld [vmem:[%s1 + $0xe0] sm:$0xff]
      %v565 = vld [vmem:[%s1 + $0xe8] sm:$0xff]
      %v566 = vld [vmem:[%s1 + $0xf0] sm:$0xff]
      %v567 = vld [vmem:[%s1 + $0xf8] sm:$0xff]
      %v568 = vld [vmem:[%s2] sm:$0x3]
      %v570 = vlaneseq
      %v571 = vshrl.u32 %v570, 7
      %v572 = vsub.s32 0, %v571
      %v573 = vrot.slane %v568, %v572
      %v574 = vlaneseq
      %v575 = vshrl.u32 %v574, 7
      %v576 = vsub.s32 1, %v575
      %v577 = vrot.slane %v568, %v576
      %v612 = vunpack.c.l.b16 %v536
      %v613 = vunpack.c.h.b16 %v536
      %v614 = vunpack.c.l.b16 %v537
      %v615 = vunpack.c.h.b16 %v537
      %v616 = vunpack.c.l.b16 %v538
      %v617 = vunpack.c.h.b16 %v538
      %v618 = vunpack.c.l.b16 %v539
      %v619 = vunpack.c.h.b16 %v539
      %v620 = vunpack.c.l.b16 %v540
      %v621 = vunpack.c.h.b16 %v540
      %v622 = vunpack.c.l.b16 %v541
      %v623 = vunpack.c.h.b16 %v541
      %v624 = vunpack.c.l.b16 %v542
      %v625 = vunpack.c.h.b16 %v542
      %v626 = vunpack.c.l.b16 %v543
      %v627 = vunpack.c.h.b16 %v543
      %v628 = vunpack.c.l.b16 %v544
      %v629 = vunpack.c.h.b16 %v544
      %v630 = vunpack.c.l.b16 %v545
      %v631 = vunpack.c.h.b16 %v545
      %v632 = vunpack.c.l.b16 %v546
      %v633 = vunpack.c.h.b16 %v546
      %v634 = vunpack.c.l.b16 %v547
      %v635 = vunpack.c.h.b16 %v547
      %v636 = vunpack.c.l.b16 %v548
      %v637 = vunpack.c.h.b16 %v548
      %v638 = vunpack.c.l.b16 %v549
      %v639 = vunpack.c.h.b16 %v549
      %v640 = vunpack.c.l.b16 %v550
      %v641 = vunpack.c.h.b16 %v550
      %v642 = vunpack.c.l.b16 %v551
      %v643 = vunpack.c.h.b16 %v551
      %v644 = vunpack.c.l.b16 %v552
      %v645 = vunpack.c.h.b16 %v552
      %v646 = vunpack.c.l.b16 %v553
      %v647 = vunpack.c.h.b16 %v553
      %v648 = vunpack.c.l.b16 %v554
      %v649 = vunpack.c.h.b16 %v554
      %v650 = vunpack.c.l.b16 %v555
      %v651 = vunpack.c.h.b16 %v555
      %v652 = vunpack.c.l.b16 %v556
      %v653 = vunpack.c.h.b16 %v556
      %v654 = vunpack.c.l.b16 %v557
      %v655 = vunpack.c.h.b16 %v557
      %v656 = vunpack.c.l.b16 %v558
      %v657 = vunpack.c.h.b16 %v558
      %v658 = vunpack.c.l.b16 %v559
      %v659 = vunpack.c.h.b16 %v559
      %v660 = vunpack.c.l.b16 %v560
      %v661 = vunpack.c.h.b16 %v560
      %v662 = vunpack.c.l.b16 %v561
      %v663 = vunpack.c.h.b16 %v561
      %v664 = vunpack.c.l.b16 %v562
      %v665 = vunpack.c.h.b16 %v562
      %v666 = vunpack.c.l.b16 %v563
      %v667 = vunpack.c.h.b16 %v563
      %v668 = vunpack.c.l.b16 %v564
      %v669 = vunpack.c.h.b16 %v564
      %v670 = vunpack.c.l.b16 %v565
      %v671 = vunpack.c.h.b16 %v565
      %v672 = vunpack.c.l.b16 %v566
      %v673 = vunpack.c.h.b16 %v566
      %v674 = vunpack.c.l.b16 %v567
      %v675 = vunpack.c.h.b16 %v567
      %v676 = vpack.c.b16 %v614, %v612
      %v677 = vpack.c.b16 %v615, %v613
      %v678 = vpack.c.b16 %v618, %v616
      %v679 = vpack.c.b16 %v619, %v617
      %v680 = vpack.c.b16 %v622, %v620
      %v681 = vpack.c.b16 %v623, %v621
      %v682 = vpack.c.b16 %v626, %v624
      %v683 = vpack.c.b16 %v627, %v625
      %v684 = vpack.c.b16 %v630, %v628
      %v685 = vpack.c.b16 %v631, %v629
      %v686 = vpack.c.b16 %v634, %v632
      %v687 = vpack.c.b16 %v635, %v633
      %v688 = vpack.c.b16 %v638, %v636
      %v689 = vpack.c.b16 %v639, %v637
      %v690 = vpack.c.b16 %v642, %v640
      %v691 = vpack.c.b16 %v643, %v641
      %v692 = vpack.c.b16 %v646, %v644
      %v693 = vpack.c.b16 %v647, %v645
      %v694 = vpack.c.b16 %v650, %v648
      %v695 = vpack.c.b16 %v651, %v649
      %v696 = vpack.c.b16 %v654, %v652
      %v697 = vpack.c.b16 %v655, %v653
      %v698 = vpack.c.b16 %v658, %v656
      %v699 = vpack.c.b16 %v659, %v657
      %v700 = vpack.c.b16 %v662, %v660
      %v701 = vpack.c.b16 %v663, %v661
      %v702 = vpack.c.b16 %v666, %v664
      %v703 = vpack.c.b16 %v667, %v665
      %v704 = vpack.c.b16 %v670, %v668
      %v705 = vpack.c.b16 %v671, %v669
      %v706 = vpack.c.b16 %v674, %v672
      %v707 = vpack.c.b16 %v675, %v673
      %740 = vmatprep.subr.bf16.mxu0 %v677
      %741 = vmatpush1.bf16.msra.mxu0 %v676
      %742 = vmatprep.subr.bf16.mxu0 %v679
      %743 = vmatpush1.bf16.msra.mxu0 %v678
      %744 = vmatprep.subr.bf16.mxu0 %v681
      %745 = vmatpush1.bf16.msra.mxu0 %v680
      %746 = vmatprep.subr.bf16.mxu0 %v683
      %747 = vmatpush1.bf16.msra.mxu0 %v682
      %748 = vmatprep.subr.bf16.mxu0 %v685
      %749 = vmatpush1.bf16.msra.mxu0 %v684
      %750 = vmatprep.subr.bf16.mxu0 %v687
      %751 = vmatpush1.bf16.msra.mxu0 %v686
      %752 = vmatprep.subr.bf16.mxu0 %v689
      %753 = vmatpush1.bf16.msra.mxu0 %v688
      %754 = vmatprep.subr.bf16.mxu0 %v691
      %755 = vmatpush1.bf16.msra.mxu0 %v690
      %756 = vmatprep.subr.bf16.mxu0 %v693
      %757 = vmatpush1.bf16.msra.mxu0 %v692
      %758 = vmatprep.subr.bf16.mxu0 %v695
      %759 = vmatpush1.bf16.msra.mxu0 %v694
      %760 = vmatprep.subr.bf16.mxu0 %v697
      %761 = vmatpush1.bf16.msra.mxu0 %v696
      %762 = vmatprep.subr.bf16.mxu0 %v699
      %763 = vmatpush1.bf16.msra.mxu0 %v698
      %764 = vmatprep.subr.bf16.mxu0 %v701
      %765 = vmatpush1.bf16.msra.mxu0 %v700
      %766 = vmatprep.subr.bf16.mxu0 %v703
      %767 = vmatpush1.bf16.msra.mxu0 %v702
      %768 = vmatprep.subr.bf16.mxu0 %v705
      %769 = vmatpush1.bf16.msra.mxu0 %v704
      %770 = vmatprep.subr.bf16.mxu0 %v707
      %771 = vmatpush1.bf16.msra.mxu0 %v706
      %772 = vmatprep.mubr.bf16.mxu0 %v505
      %773 = vmatmul.mubr.bf16.gmra.mrb[0].mxu0 %v504
      %v774 = vpop.f32.mrb[0].mxu0
      %v775 = vadd.f32 %v573, %v774
      %v776 = vpop.f32.mrb[0].mxu0
      %v777 = vadd.f32 %v577, %v776
      %v778 = vpop.f32.mrb[0].mxu0
      %v779 = vadd.f32 %v573, %v778
      %v780 = vpop.f32.mrb[0].mxu0
      %v781 = vadd.f32 %v577, %v780
      %782 = vmatprep.mubr.bf16.mxu0 %v507
      %783 = vmatmul.mubr.bf16.gmra.mrb[0].mxu0 %v506
      %v784 = vpop.f32.mrb[0].mxu0
      %v785 = vadd.f32 %v573, %v784
      %v786 = vpop.f32.mrb[0].mxu0
      %v787 = vadd.f32 %v577, %v786
      %v788 = vpop.f32.mrb[0].mxu0
      %v789 = vadd.f32 %v573, %v788
      %v790 = vpop.f32.mrb[0].mxu0
      %v791 = vadd.f32 %v577, %v790
      %792 = vmatprep.mubr.bf16.mxu0 %v509
      %793 = vmatmul.mubr.bf16.gmra.mrb[0].mxu0 %v508
      %v794 = vpop.f32.mrb[0].mxu0
      %v795 = vadd.f32 %v573, %v794
      %v796 = vpop.f32.mrb[0].mxu0
      %v797 = vadd.f32 %v577, %v796
      %v798 = vpop.f32.mrb[0].mxu0
      %v799 = vadd.f32 %v573, %v798
      %v800 = vpop.f32.mrb[0].mxu0
      %v801 = vadd.f32 %v577, %v800
      %802 = vmatprep.mubr.bf16.mxu0 %v511
      %803 = vmatmul.mubr.bf16.gmra.mrb[0].mxu0 %v510
      %v804 = vpop.f32.mrb[0].mxu0
      %v805 = vadd.f32 %v573, %v804
      %v806 = vpop.f32.mrb[0].mxu0
      %v807 = vadd.f32 %v577, %v806
      %v808 = vpop.f32.mrb[0].mxu0
      %v809 = vadd.f32 %v573, %v808
      %v810 = vpop.f32.mrb[0].mxu0
      %v811 = vadd.f32 %v577, %v810
      %812 = vmatprep.mubr.bf16.mxu0 %v513
      %813 = vmatmul.mubr.bf16.gmra.mrb[0].mxu0 %v512
      %v814 = vpop.f32.mrb[0].mxu0
      %v815 = vadd.f32 %v573, %v814
      %v816 = vpop.f32.mrb[0].mxu0
      %v817 = vadd.f32 %v577, %v816
      %v818 = vpop.f32.mrb[0].mxu0
      %v819 = vadd.f32 %v573, %v818
      %v820 = vpop.f32.mrb[0].mxu0
      %v821 = vadd.f32 %v577, %v820
      %822 = vmatprep.mubr.bf16.mxu0 %v515
      %823 = vmatmul.mubr.bf16.gmra.mrb[0].mxu0 %v514
      %v824 = vpop.f32.mrb[0].mxu0
      %v825 = vadd.f32 %v573, %v824
      %v826 = vpop.f32.mrb[0].mxu0
      %v827 = vadd.f32 %v577, %v826
      %v828 = vpop.f32.mrb[0].mxu0
      %v829 = vadd.f32 %v573, %v828
      %v830 = vpop.f32.mrb[0].mxu0
      %v831 = vadd.f32 %v577, %v830
      %832 = vmatprep.mubr.bf16.mxu0 %v517
      %833 = vmatmul.mubr.bf16.gmra.mrb[0].mxu0 %v516
      %v834 = vpop.f32.mrb[0].mxu0
      %v835 = vadd.f32 %v573, %v834
      %v836 = vpop.f32.mrb[0].mxu0
      %v837 = vadd.f32 %v577, %v836
      %v838 = vpop.f32.mrb[0].mxu0
      %v839 = vadd.f32 %v573, %v838
      %v840 = vpop.f32.mrb[0].mxu0
      %v841 = vadd.f32 %v577, %v840
      %842 = vmatprep.mubr.bf16.mxu0 %v519
      %843 = vmatmul.mubr.bf16.gmra.mrb[0].mxu0 %v518
      %v844 = vpop.f32.mrb[0].mxu0
      %v845 = vadd.f32 %v573, %v844
      %v846 = vpop.f32.mrb[0].mxu0
      %v847 = vadd.f32 %v577, %v846
      %v848 = vpop.f32.mrb[0].mxu0
      %v849 = vadd.f32 %v573, %v848
      %v850 = vpop.f32.mrb[0].mxu0
      %v851 = vadd.f32 %v577, %v850
      %852 = vmatprep.mubr.bf16.mxu0 %v521
      %853 = vmatmul.mubr.bf16.gmra.mrb[0].mxu0 %v520
      %v854 = vpop.f32.mrb[0].mxu0
      %v855 = vadd.f32 %v573, %v854
      %v856 = vpop.f32.mrb[0].mxu0
      %v857 = vadd.f32 %v577, %v856
      %v858 = vpop.f32.mrb[0].mxu0
      %v859 = vadd.f32 %v573, %v858
      %v860 = vpop.f32.mrb[0].mxu0
      %v861 = vadd.f32 %v577, %v860
      %862 = vmatprep.mubr.bf16.mxu0 %v523
      %863 = vmatmul.mubr.bf16.gmra.mrb[0].mxu0 %v522
      %v864 = vpop.f32.mrb[0].mxu0
      %v865 = vadd.f32 %v573, %v864
      %v866 = vpop.f32.mrb[0].mxu0
      %v867 = vadd.f32 %v577, %v866
      %v868 = vpop.f32.mrb[0].mxu0
      %v869 = vadd.f32 %v573, %v868
      %v870 = vpop.f32.mrb[0].mxu0
      %v871 = vadd.f32 %v577, %v870
      %872 = vmatprep.mubr.bf16.mxu0 %v525
      %873 = vmatmul.mubr.bf16.gmra.mrb[0].mxu0 %v524
      %v874 = vpop.f32.mrb[0].mxu0
      %v875 = vadd.f32 %v573, %v874
      %v876 = vpop.f32.mrb[0].mxu0
      %v877 = vadd.f32 %v577, %v876
      %v878 = vpop.f32.mrb[0].mxu0
      %v879 = vadd.f32 %v573, %v878
      %v880 = vpop.f32.mrb[0].mxu0
      %v881 = vadd.f32 %v577, %v880
      %882 = vmatprep.mubr.bf16.mxu0 %v527
      %883 = vmatmul.mubr.bf16.gmra.mrb[0].mxu0 %v526
      %v884 = vpop.f32.mrb[0].mxu0
      %v885 = vadd.f32 %v573, %v884
      %v886 = vpop.f32.mrb[0].mxu0
      %v887 = vadd.f32 %v577, %v886
      %v888 = vpop.f32.mrb[0].mxu0
      %v889 = vadd.f32 %v573, %v888
      %v890 = vpop.f32.mrb[0].mxu0
      %v891 = vadd.f32 %v577, %v890
      %892 = vmatprep.mubr.bf16.mxu0 %v529
      %893 = vmatmul.mubr.bf16.gmra.mrb[0].mxu0 %v528
      %v894 = vpop.f32.mrb[0].mxu0
      %v895 = vadd.f32 %v573, %v894
      %v896 = vpop.f32.mrb[0].mxu0
      %v897 = vadd.f32 %v577, %v896
      %v898 = vpop.f32.mrb[0].mxu0
      %v899 = vadd.f32 %v573, %v898
      %v900 = vpop.f32.mrb[0].mxu0
      %v901 = vadd.f32 %v577, %v900
      %902 = vmatprep.mubr.bf16.mxu0 %v531
      %903 = vmatmul.mubr.bf16.gmra.mrb[0].mxu0 %v530
      %v904 = vpop.f32.mrb[0].mxu0
      %v905 = vadd.f32 %v573, %v904
      %v906 = vpop.f32.mrb[0].mxu0
      %v907 = vadd.f32 %v577, %v906
      %v908 = vpop.f32.mrb[0].mxu0
      %v909 = vadd.f32 %v573, %v908
      %v910 = vpop.f32.mrb[0].mxu0
      %v911 = vadd.f32 %v577, %v910
      %912 = vmatprep.mubr.bf16.mxu0 %v533
      %913 = vmatmul.mubr.bf16.gmra.mrb[0].mxu0 %v532
      %v914 = vpop.f32.mrb[0].mxu0
      %v915 = vadd.f32 %v573, %v914
      %v916 = vpop.f32.mrb[0].mxu0
      %v917 = vadd.f32 %v577, %v916
      %v918 = vpop.f32.mrb[0].mxu0
      %v919 = vadd.f32 %v573, %v918
      %v920 = vpop.f32.mrb[0].mxu0
      %v921 = vadd.f32 %v577, %v920
      %922 = vmatprep.mubr.bf16.mxu0 %v535
      %923 = vmatmul.mubr.bf16.gmra.mrb[0].mxu0 %v534
      %v924 = vpop.f32.mrb[0].mxu0
      %v925 = vadd.f32 %v573, %v924
      %v926 = vpop.f32.mrb[0].mxu0
      %v927 = vadd.f32 %v577, %v926
      %v928 = vpop.f32.mrb[0].mxu0
      %v929 = vadd.f32 %v573, %v928
      %v930 = vpop.f32.mrb[0].mxu0
      %v931 = vadd.f32 %v577, %v930
      %932 = vdwg.mxu0
      %v933 = vmax.f32 %v775, 0.0
      %v934 = vmax.f32 %v777, 0.0
      %v935 = vmax.f32 %v779, 0.0
      %v936 = vmax.f32 %v781, 0.0
      %v937 = vmax.f32 %v785, 0.0
      %v938 = vmax.f32 %v787, 0.0
      %v939 = vmax.f32 %v789, 0.0
      %v940 = vmax.f32 %v791, 0.0
      %v941 = vmax.f32 %v795, 0.0
      %v942 = vmax.f32 %v797, 0.0
      %v943 = vmax.f32 %v799, 0.0
      %v944 = vmax.f32 %v801, 0.0
      %v945 = vmax.f32 %v805, 0.0
      %v946 = vmax.f32 %v807, 0.0
      %v947 = vmax.f32 %v809, 0.0
      %v948 = vmax.f32 %v811, 0.0
      %v949 = vmax.f32 %v815, 0.0
      %v950 = vmax.f32 %v817, 0.0
      %v951 = vmax.f32 %v819, 0.0
      %v952 = vmax.f32 %v821, 0.0
      %v953 = vmax.f32 %v825, 0.0
      %v954 = vmax.f32 %v827, 0.0
      %v955 = vmax.f32 %v829, 0.0
      %v956 = vmax.f32 %v831, 0.0
      %v957 = vmax.f32 %v835, 0.0
      %v958 = vmax.f32 %v837, 0.0
      %v959 = vmax.f32 %v839, 0.0
      %v960 = vmax.f32 %v841, 0.0
      %v961 = vmax.f32 %v845, 0.0
      %v962 = vmax.f32 %v847, 0.0
      %v963 = vmax.f32 %v849, 0.0
      %v964 = vmax.f32 %v851, 0.0
      %v965 = vmax.f32 %v855, 0.0
      %v966 = vmax.f32 %v857, 0.0
      %v967 = vmax.f32 %v859, 0.0
      %v968 = vmax.f32 %v861, 0.0
      %v969 = vmax.f32 %v865, 0.0
      %v970 = vmax.f32 %v867, 0.0
      %v971 = vmax.f32 %v869, 0.0
      %v972 = vmax.f32 %v871, 0.0
      %v973 = vmax.f32 %v875, 0.0
      %v974 = vmax.f32 %v877, 0.0
      %v975 = vmax.f32 %v879, 0.0
      %v976 = vmax.f32 %v881, 0.0
      %v977 = vmax.f32 %v885, 0.0
      %v978 = vmax.f32 %v887, 0.0
      %v979 = vmax.f32 %v889, 0.0
      %v980 = vmax.f32 %v891, 0.0
      %v981 = vmax.f32 %v895, 0.0
      %v982 = vmax.f32 %v897, 0.0
      %v983 = vmax.f32 %v899, 0.0
      %v984 = vmax.f32 %v901, 0.0
      %v985 = vmax.f32 %v905, 0.0
      %v986 = vmax.f32 %v907, 0.0
      %v987 = vmax.f32 %v909, 0.0
      %v988 = vmax.f32 %v911, 0.0
      %v989 = vmax.f32 %v915, 0.0
      %v990 = vmax.f32 %v917, 0.0
      %v991 = vmax.f32 %v919, 0.0
      %v992 = vmax.f32 %v921, 0.0
      %v993 = vmax.f32 %v925, 0.0
      %v994 = vmax.f32 %v927, 0.0
      %v995 = vmax.f32 %v929, 0.0
      %v996 = vmax.f32 %v931, 0.0
      %v997 = vpack.c.bf16 %v935, %v933
      %v998 = vpack.c.bf16 %v936, %v934
      %v999 = vpack.c.bf16 %v939, %v937
      %v1000 = vpack.c.bf16 %v940, %v938
      %v1001 = vpack.c.bf16 %v943, %v941
      %v1002 = vpack.c.bf16 %v944, %v942
      %v1003 = vpack.c.bf16 %v947, %v945
      %v1004 = vpack.c.bf16 %v948, %v946
      %v1005 = vpack.c.bf16 %v951, %v949
      %v1006 = vpack.c.bf16 %v952, %v950
      %v1007 = vpack.c.bf16 %v955, %v953
      %v1008 = vpack.c.bf16 %v956, %v954
      %v1009 = vpack.c.bf16 %v959, %v957
      %v1010 = vpack.c.bf16 %v960, %v958
      %v1011 = vpack.c.bf16 %v963, %v961
      %v1012 = vpack.c.bf16 %v964, %v962
      %v1013 = vpack.c.bf16 %v967, %v965
      %v1014 = vpack.c.bf16 %v968, %v966
      %v1015 = vpack.c.bf16 %v971, %v969
      %v1016 = vpack.c.bf16 %v972, %v970
      %v1017 = vpack.c.bf16 %v975, %v973
      %v1018 = vpack.c.bf16 %v976, %v974
      %v1019 = vpack.c.bf16 %v979, %v977
      %v1020 = vpack.c.bf16 %v980, %v978
      %v1021 = vpack.c.bf16 %v983, %v981
      %v1022 = vpack.c.bf16 %v984, %v982
      %v1023 = vpack.c.bf16 %v987, %v985
      %v1024 = vpack.c.bf16 %v988, %v986
      %v1025 = vpack.c.bf16 %v991, %v989
      %v1026 = vpack.c.bf16 %v992, %v990
      %v1027 = vpack.c.bf16 %v995, %v993
      %v1028 = vpack.c.bf16 %v996, %v994
      %v1029 = vld [vmem:[%s3] sm:$0xf]
      %v1030 = vld [vmem:[%s3 + $0x4] sm:$0xf]
      %v1031 = vld [vmem:[%s3 + $0x8] sm:$0xf]
      %v1032 = vld [vmem:[%s3 + $0xc] sm:$0xf]
      %v1033 = vld [vmem:[%s3 + $0x10] sm:$0xf]
      %v1034 = vld [vmem:[%s3 + $0x14] sm:$0xf]
      %v1035 = vld [vmem:[%s3 + $0x18] sm:$0xf]
      %v1036 = vld [vmem:[%s3 + $0x1c] sm:$0xf]
      %v1037 = vld [vmem:[%s3 + $0x20] sm:$0xf]
      %v1038 = vld [vmem:[%s3 + $0x24] sm:$0xf]
      %v1039 = vld [vmem:[%s3 + $0x28] sm:$0xf]
      %v1040 = vld [vmem:[%s3 + $0x2c] sm:$0xf]
      %v1041 = vld [vmem:[%s3 + $0x30] sm:$0xf]
      %v1042 = vld [vmem:[%s3 + $0x34] sm:$0xf]
      %v1043 = vld [vmem:[%s3 + $0x38] sm:$0xf]
      %v1044 = vld [vmem:[%s3 + $0x3c] sm:$0xf]
      %v1045 = vld [vmem:[%s3 + $0x40] sm:$0xf]
      %v1046 = vld [vmem:[%s3 + $0x44] sm:$0xf]
      %v1047 = vld [vmem:[%s3 + $0x48] sm:$0xf]
      %v1048 = vld [vmem:[%s3 + $0x4c] sm:$0xf]
      %v1049 = vld [vmem:[%s3 + $0x50] sm:$0xf]
      %v1050 = vld [vmem:[%s3 + $0x54] sm:$0xf]
      %v1051 = vld [vmem:[%s3 + $0x58] sm:$0xf]
      %v1052 = vld [vmem:[%s3 + $0x5c] sm:$0xf]
      %v1053 = vld [vmem:[%s3 + $0x60] sm:$0xf]
      %v1054 = vld [vmem:[%s3 + $0x64] sm:$0xf]
      %v1055 = vld [vmem:[%s3 + $0x68] sm:$0xf]
      %v1056 = vld [vmem:[%s3 + $0x6c] sm:$0xf]
      %v1057 = vld [vmem:[%s3 + $0x70] sm:$0xf]
      %v1058 = vld [vmem:[%s3 + $0x74] sm:$0xf]
      %v1059 = vld [vmem:[%s3 + $0x78] sm:$0xf]
      %v1060 = vld [vmem:[%s3 + $0x7c] sm:$0xf]
      %v1061 = vld [vmem:[%s4] sm:$0x1]
      %v1063 = vlaneseq
      %v1064 = vshrl.u32 %v1063, 7
      %v1065 = vsub.s32 0, %v1064
      %v1066 = vrot.slane %v1061, %v1065
      %v1100 = vunpack.c.l.b16 %v1029
      %v1101 = vunpack.c.l.b16 %v1030
      %v1102 = vunpack.c.l.b16 %v1031
      %v1103 = vunpack.c.l.b16 %v1032
      %v1104 = vunpack.c.l.b16 %v1033
      %v1105 = vunpack.c.l.b16 %v1034
      %v1106 = vunpack.c.l.b16 %v1035
      %v1107 = vunpack.c.l.b16 %v1036
      %v1108 = vunpack.c.l.b16 %v1037
      %v1109 = vunpack.c.l.b16 %v1038
      %v1110 = vunpack.c.l.b16 %v1039
      %v1111 = vunpack.c.l.b16 %v1040
      %v1112 = vunpack.c.l.b16 %v1041
      %v1113 = vunpack.c.l.b16 %v1042
      %v1114 = vunpack.c.l.b16 %v1043
      %v1115 = vunpack.c.l.b16 %v1044
      %v1116 = vunpack.c.l.b16 %v1045
      %v1117 = vunpack.c.l.b16 %v1046
      %v1118 = vunpack.c.l.b16 %v1047
      %v1119 = vunpack.c.l.b16 %v1048
      %v1120 = vunpack.c.l.b16 %v1049
      %v1121 = vunpack.c.l.b16 %v1050
      %v1122 = vunpack.c.l.b16 %v1051
      %v1123 = vunpack.c.l.b16 %v1052
      %v1124 = vunpack.c.l.b16 %v1053
      %v1125 = vunpack.c.l.b16 %v1054
      %v1126 = vunpack.c.l.b16 %v1055
      %v1127 = vunpack.c.l.b16 %v1056
      %v1128 = vunpack.c.l.b16 %v1057
      %v1129 = vunpack.c.l.b16 %v1058
      %v1130 = vunpack.c.l.b16 %v1059
      %v1131 = vunpack.c.l.b16 %v1060
      %v1132 = vpack.c.b16 %v1101, %v1100
      %v1133 = vpack.c.b16 %v1103, %v1102
      %v1134 = vpack.c.b16 %v1105, %v1104
      %v1135 = vpack.c.b16 %v1107, %v1106
      %v1136 = vpack.c.b16 %v1109, %v1108
      %v1137 = vpack.c.b16 %v1111, %v1110
      %v1138 = vpack.c.b16 %v1113, %v1112
      %v1139 = vpack.c.b16 %v1115, %v1114
      %v1140 = vpack.c.b16 %v1117, %v1116
      %v1141 = vpack.c.b16 %v1119, %v1118
      %v1142 = vpack.c.b16 %v1121, %v1120
      %v1143 = vpack.c.b16 %v1123, %v1122
      %v1144 = vpack.c.b16 %v1125, %v1124
      %v1145 = vpack.c.b16 %v1127, %v1126
      %v1146 = vpack.c.b16 %v1129, %v1128
      %v1147 = vpack.c.b16 %v1131, %v1130
      %1164 = vmatprep.subr.bf16.mxu0 0
      %1165 = vmatpush1.bf16.msra.mxu0 %v1132
      %1166 = vmatprep.subr.bf16.mxu0 0
      %1167 = vmatpush1.bf16.msra.mxu0 %v1133
      %1168 = vmatprep.subr.bf16.mxu0 0
      %1169 = vmatpush1.bf16.msra.mxu0 %v1134
      %1170 = vmatprep.subr.bf16.mxu0 0
      %1171 = vmatpush1.bf16.msra.mxu0 %v1135
      %1172 = vmatprep.subr.bf16.mxu0 0
      %1173 = vmatpush1.bf16.msra.mxu0 %v1136
      %1174 = vmatprep.subr.bf16.mxu0 0
      %1175 = vmatpush1.bf16.msra.mxu0 %v1137
      %1176 = vmatprep.subr.bf16.mxu0 0
      %1177 = vmatpush1.bf16.msra.mxu0 %v1138
      %1178 = vmatprep.subr.bf16.mxu0 0
      %1179 = vmatpush1.bf16.msra.mxu0 %v1139
      %1180 = vmatprep.subr.bf16.mxu0 0
      %1181 = vmatpush1.bf16.msra.mxu0 %v1140
      %1182 = vmatprep.subr.bf16.mxu0 0
      %1183 = vmatpush1.bf16.msra.mxu0 %v1141
      %1184 = vmatprep.subr.bf16.mxu0 0
      %1185 = vmatpush1.bf16.msra.mxu0 %v1142
      %1186 = vmatprep.subr.bf16.mxu0 0
      %1187 = vmatpush1.bf16.msra.mxu0 %v1143
      %1188 = vmatprep.subr.bf16.mxu0 0
      %1189 = vmatpush1.bf16.msra.mxu0 %v1144
      %1190 = vmatprep.subr.bf16.mxu0 0
      %1191 = vmatpush1.bf16.msra.mxu0 %v1145
      %1192 = vmatprep.subr.bf16.mxu0 0
      %1193 = vmatpush1.bf16.msra.mxu0 %v1146
      %1194 = vmatprep.subr.bf16.mxu0 0
      %1195 = vmatpush1.bf16.msra.mxu0 %v1147
      %1196 = vmatprep.mubr.bf16.mxu0 %v998
      %1197 = vmatmul.mubr.bf16.gmra.mrb[0].mxu0 %v997
      %v1198 = vpop.f32.mrb[0].mxu0
      %v1199 = vadd.f32 %v1066, %v1198
      %v1200 = vpop.f32.mrb[0].mxu0
      %v1201 = vpop.f32.mrb[0].mxu0
      %v1202 = vadd.f32 %v1066, %v1201
      %v1203 = vpop.f32.mrb[0].mxu0
      %1204 = vmatprep.mubr.bf16.mxu0 %v1000
      %1205 = vmatmul.mubr.bf16.gmra.mrb[0].mxu0 %v999
      %v1206 = vpop.f32.mrb[0].mxu0
      %v1207 = vadd.f32 %v1066, %v1206
      %v1208 = vpop.f32.mrb[0].mxu0
      %v1209 = vpop.f32.mrb[0].mxu0
      %v1210 = vadd.f32 %v1066, %v1209
      %v1211 = vpop.f32.mrb[0].mxu0
      %1212 = vmatprep.mubr.bf16.mxu0 %v1002
      %1213 = vmatmul.mubr.bf16.gmra.mrb[0].mxu0 %v1001
      %v1214 = vpop.f32.mrb[0].mxu0
      %v1215 = vadd.f32 %v1066, %v1214
      %v1216 = vpop.f32.mrb[0].mxu0
      %v1217 = vpop.f32.mrb[0].mxu0
      %v1218 = vadd.f32 %v1066, %v1217
      %v1219 = vpop.f32.mrb[0].mxu0
      %1220 = vmatprep.mubr.bf16.mxu0 %v1004
      %1221 = vmatmul.mubr.bf16.gmra.mrb[0].mxu0 %v1003
      %v1222 = vpop.f32.mrb[0].mxu0
      %v1223 = vadd.f32 %v1066, %v1222
      %v1224 = vpop.f32.mrb[0].mxu0
      %v1225 = vpop.f32.mrb[0].mxu0
      %v1226 = vadd.f32 %v1066, %v1225
      %v1227 = vpop.f32.mrb[0].mxu0
      %1228 = vmatprep.mubr.bf16.mxu0 %v1006
      %1229 = vmatmul.mubr.bf16.gmra.mrb[0].mxu0 %v1005
      %v1230 = vpop.f32.mrb[0].mxu0
      %v1231 = vadd.f32 %v1066, %v1230
      %v1232 = vpop.f32.mrb[0].mxu0
      %v1233 = vpop.f32.mrb[0].mxu0
      %v1234 = vadd.f32 %v1066, %v1233
      %v1235 = vpop.f32.mrb[0].mxu0
      %1236 = vmatprep.mubr.bf16.mxu0 %v1008
      %1237 = vmatmul.mubr.bf16.gmra.mrb[0].mxu0 %v1007
      %v1238 = vpop.f32.mrb[0].mxu0
      %v1239 = vadd.f32 %v1066, %v1238
      %v1240 = vpop.f32.mrb[0].mxu0
      %v1241 = vpop.f32.mrb[0].mxu0
      %v1242 = vadd.f32 %v1066, %v1241
      %v1243 = vpop.f32.mrb[0].mxu0
      %1244 = vmatprep.mubr.bf16.mxu0 %v1010
      %1245 = vmatmul.mubr.bf16.gmra.mrb[0].mxu0 %v1009
      %v1246 = vpop.f32.mrb[0].mxu0
      %v1247 = vadd.f32 %v1066, %v1246
      %v1248 = vpop.f32.mrb[0].mxu0
      %v1249 = vpop.f32.mrb[0].mxu0
      %v1250 = vadd.f32 %v1066, %v1249
      %v1251 = vpop.f32.mrb[0].mxu0
      %1252 = vmatprep.mubr.bf16.mxu0 %v1012
      %1253 = vmatmul.mubr.bf16.gmra.mrb[0].mxu0 %v1011
      %v1254 = vpop.f32.mrb[0].mxu0
      %v1255 = vadd.f32 %v1066, %v1254
      %v1256 = vpop.f32.mrb[0].mxu0
      %v1257 = vpop.f32.mrb[0].mxu0
      %v1258 = vadd.f32 %v1066, %v1257
      %v1259 = vpop.f32.mrb[0].mxu0
      %1260 = vmatprep.mubr.bf16.mxu0 %v1014
      %1261 = vmatmul.mubr.bf16.gmra.mrb[0].mxu0 %v1013
      %v1262 = vpop.f32.mrb[0].mxu0
      %v1263 = vadd.f32 %v1066, %v1262
      %v1264 = vpop.f32.mrb[0].mxu0
      %v1265 = vpop.f32.mrb[0].mxu0
      %v1266 = vadd.f32 %v1066, %v1265
      %v1267 = vpop.f32.mrb[0].mxu0
      %1268 = vmatprep.mubr.bf16.mxu0 %v1016
      %1269 = vmatmul.mubr.bf16.gmra.mrb[0].mxu0 %v1015
      %v1270 = vpop.f32.mrb[0].mxu0
      %v1271 = vadd.f32 %v1066, %v1270
      %v1272 = vpop.f32.mrb[0].mxu0
      %v1273 = vpop.f32.mrb[0].mxu0
      %v1274 = vadd.f32 %v1066, %v1273
      %v1275 = vpop.f32.mrb[0].mxu0
      %1276 = vmatprep.mubr.bf16.mxu0 %v1018
      %1277 = vmatmul.mubr.bf16.gmra.mrb[0].mxu0 %v1017
      %v1278 = vpop.f32.mrb[0].mxu0
      %v1279 = vadd.f32 %v1066, %v1278
      %v1280 = vpop.f32.mrb[0].mxu0
      %v1281 = vpop.f32.mrb[0].mxu0
      %v1282 = vadd.f32 %v1066, %v1281
      %v1283 = vpop.f32.mrb[0].mxu0
      %1284 = vmatprep.mubr.bf16.mxu0 %v1020
      %1285 = vmatmul.mubr.bf16.gmra.mrb[0].mxu0 %v1019
      %v1286 = vpop.f32.mrb[0].mxu0
      %v1287 = vadd.f32 %v1066, %v1286
      %v1288 = vpop.f32.mrb[0].mxu0
      %v1289 = vpop.f32.mrb[0].mxu0
      %v1290 = vadd.f32 %v1066, %v1289
      %v1291 = vpop.f32.mrb[0].mxu0
      %1292 = vmatprep.mubr.bf16.mxu0 %v1022
      %1293 = vmatmul.mubr.bf16.gmra.mrb[0].mxu0 %v1021
      %v1294 = vpop.f32.mrb[0].mxu0
      %v1295 = vadd.f32 %v1066, %v1294
      %v1296 = vpop.f32.mrb[0].mxu0
      %v1297 = vpop.f32.mrb[0].mxu0
      %v1298 = vadd.f32 %v1066, %v1297
      %v1299 = vpop.f32.mrb[0].mxu0
      %1300 = vmatprep.mubr.bf16.mxu0 %v1024
      %1301 = vmatmul.mubr.bf16.gmra.mrb[0].mxu0 %v1023
      %v1302 = vpop.f32.mrb[0].mxu0
      %v1303 = vadd.f32 %v1066, %v1302
      %v1304 = vpop.f32.mrb[0].mxu0
      %v1305 = vpop.f32.mrb[0].mxu0
      %v1306 = vadd.f32 %v1066, %v1305
      %v1307 = vpop.f32.mrb[0].mxu0
      %1308 = vmatprep.mubr.bf16.mxu0 %v1026
      %1309 = vmatmul.mubr.bf16.gmra.mrb[0].mxu0 %v1025
      %v1310 = vpop.f32.mrb[0].mxu0
      %v1311 = vadd.f32 %v1066, %v1310
      %v1312 = vpop.f32.mrb[0].mxu0
      %v1313 = vpop.f32.mrb[0].mxu0
      %v1314 = vadd.f32 %v1066, %v1313
      %v1315 = vpop.f32.mrb[0].mxu0
      %1316 = vmatprep.mubr.bf16.mxu0 %v1028
      %1317 = vmatmul.mubr.bf16.gmra.mrb[0].mxu0 %v1027
      %v1318 = vpop.f32.mrb[0].mxu0
      %v1319 = vadd.f32 %v1066, %v1318
      %v1320 = vpop.f32.mrb[0].mxu0
      %v1321 = vpop.f32.mrb[0].mxu0
      %v1322 = vadd.f32 %v1066, %v1321
      %v1323 = vpop.f32.mrb[0].mxu0
      %1324 = vdwg.mxu0
      %v1325 = vmax.f32 %v1199, 0.0
      %v1326 = vmax.f32 %v1202, 0.0
      %v1327 = vmax.f32 %v1207, 0.0
      %v1328 = vmax.f32 %v1210, 0.0
      %v1329 = vmax.f32 %v1215, 0.0
      %v1330 = vmax.f32 %v1218, 0.0
      %v1331 = vmax.f32 %v1223, 0.0
      %v1332 = vmax.f32 %v1226, 0.0
      %v1333 = vmax.f32 %v1231, 0.0
      %v1334 = vmax.f32 %v1234, 0.0
      %v1335 = vmax.f32 %v1239, 0.0
      %v1336 = vmax.f32 %v1242, 0.0
      %v1337 = vmax.f32 %v1247, 0.0
      %v1338 = vmax.f32 %v1250, 0.0
      %v1339 = vmax.f32 %v1255, 0.0
      %v1340 = vmax.f32 %v1258, 0.0
      %v1341 = vmax.f32 %v1263, 0.0
      %v1342 = vmax.f32 %v1266, 0.0
      %v1343 = vmax.f32 %v1271, 0.0
      %v1344 = vmax.f32 %v1274, 0.0
      %v1345 = vmax.f32 %v1279, 0.0
      %v1346 = vmax.f32 %v1282, 0.0
      %v1347 = vmax.f32 %v1287, 0.0
      %v1348 = vmax.f32 %v1290, 0.0
      %v1349 = vmax.f32 %v1295, 0.0
      %v1350 = vmax.f32 %v1298, 0.0
      %v1351 = vmax.f32 %v1303, 0.0
      %v1352 = vmax.f32 %v1306, 0.0
      %v1353 = vmax.f32 %v1311, 0.0
      %v1354 = vmax.f32 %v1314, 0.0
      %v1355 = vmax.f32 %v1319, 0.0
      %v1356 = vmax.f32 %v1322, 0.0
      %v1357 = vpack.c.bf16 %v1326, %v1325
      %v1358 = vpack.c.bf16 %v1328, %v1327
      %v1359 = vpack.c.bf16 %v1330, %v1329
      %v1360 = vpack.c.bf16 %v1332, %v1331
      %v1361 = vpack.c.bf16 %v1334, %v1333
      %v1362 = vpack.c.bf16 %v1336, %v1335
      %v1363 = vpack.c.bf16 %v1338, %v1337
      %v1364 = vpack.c.bf16 %v1340, %v1339
      %v1365 = vpack.c.bf16 %v1342, %v1341
      %v1366 = vpack.c.bf16 %v1344, %v1343
      %v1367 = vpack.c.bf16 %v1346, %v1345
      %v1368 = vpack.c.bf16 %v1348, %v1347
      %v1369 = vpack.c.bf16 %v1350, %v1349
      %v1370 = vpack.c.bf16 %v1352, %v1351
      %v1371 = vpack.c.bf16 %v1354, %v1353
      %v1372 = vpack.c.bf16 %v1356, %v1355
      %v1373 = vld [vmem:[%s5] sm:$0xf]
      %v1374 = vld [vmem:[%s5 + $0x4] sm:$0xf]
      %v1375 = vld [vmem:[%s5 + $0x8] sm:$0xf]
      %v1376 = vld [vmem:[%s5 + $0xc] sm:$0xf]
      %v1377 = vld [vmem:[%s5 + $0x10] sm:$0xf]
      %v1378 = vld [vmem:[%s5 + $0x14] sm:$0xf]
      %v1379 = vld [vmem:[%s5 + $0x18] sm:$0xf]
      %v1380 = vld [vmem:[%s5 + $0x1c] sm:$0xf]
      %v1381 = vld [vmem:[%s5 + $0x20] sm:$0xf]
      %v1382 = vld [vmem:[%s5 + $0x24] sm:$0xf]
      %v1383 = vld [vmem:[%s5 + $0x28] sm:$0xf]
      %v1384 = vld [vmem:[%s5 + $0x2c] sm:$0xf]
      %v1385 = vld [vmem:[%s5 + $0x30] sm:$0xf]
      %v1386 = vld [vmem:[%s5 + $0x34] sm:$0xf]
      %v1387 = vld [vmem:[%s5 + $0x38] sm:$0xf]
      %v1388 = vld [vmem:[%s5 + $0x3c] sm:$0xf]
      %v1389 = vld [vmem:[%s6] sm:$0x1]
      %v1391 = vlaneseq
      %v1392 = vshrl.u32 %v1391, 7
      %v1393 = vsub.s32 0, %v1392
      %v1394 = vrot.slane %v1389, %v1393
      %v1412 = vunpack.c.l.b16 %v1373
      %v1413 = vunpack.c.l.b16 %v1374
      %v1414 = vunpack.c.l.b16 %v1375
      %v1415 = vunpack.c.l.b16 %v1376
      %v1416 = vunpack.c.l.b16 %v1377
      %v1417 = vunpack.c.l.b16 %v1378
      %v1418 = vunpack.c.l.b16 %v1379
      %v1419 = vunpack.c.l.b16 %v1380
      %v1420 = vunpack.c.l.b16 %v1381
      %v1421 = vunpack.c.l.b16 %v1382
      %v1422 = vunpack.c.l.b16 %v1383
      %v1423 = vunpack.c.l.b16 %v1384
      %v1424 = vunpack.c.l.b16 %v1385
      %v1425 = vunpack.c.l.b16 %v1386
      %v1426 = vunpack.c.l.b16 %v1387
      %v1427 = vunpack.c.l.b16 %v1388
      %v1428 = vpack.c.b16 %v1413, %v1412
      %v1429 = vpack.c.b16 %v1415, %v1414
      %v1430 = vpack.c.b16 %v1417, %v1416
      %v1431 = vpack.c.b16 %v1419, %v1418
      %v1432 = vpack.c.b16 %v1421, %v1420
      %v1433 = vpack.c.b16 %v1423, %v1422
      %v1434 = vpack.c.b16 %v1425, %v1424
      %v1435 = vpack.c.b16 %v1427, %v1426
      %1444 = vmatprep.subr.bf16.mxu0 0
      %1445 = vmatpush1.bf16.msra.mxu0 %v1428
      %1446 = vmatprep.subr.bf16.mxu0 0
      %1447 = vmatpush1.bf16.msra.mxu0 %v1429
      %1448 = vmatprep.subr.bf16.mxu0 0
      %1449 = vmatpush1.bf16.msra.mxu0 %v1430
      %1450 = vmatprep.subr.bf16.mxu0 0
      %1451 = vmatpush1.bf16.msra.mxu0 %v1431
      %1452 = vmatprep.subr.bf16.mxu0 0
      %1453 = vmatpush1.bf16.msra.mxu0 %v1432
      %1454 = vmatprep.subr.bf16.mxu0 0
      %1455 = vmatpush1.bf16.msra.mxu0 %v1433
      %1456 = vmatprep.subr.bf16.mxu0 0
      %1457 = vmatpush1.bf16.msra.mxu0 %v1434
      %1458 = vmatprep.subr.bf16.mxu0 0
      %1459 = vmatpush1.bf16.msra.mxu0 %v1435
      %1460 = vmatprep.subr.bf16.mxu0 0
      %1461 = vmatpush1.bf16.msra.mxu0 0
      %1462 = vmatprep.subr.bf16.mxu0 0
      %1463 = vmatpush1.bf16.msra.mxu0 0
      %1464 = vmatprep.subr.bf16.mxu0 0
      %1465 = vmatpush1.bf16.msra.mxu0 0
      %1466 = vmatprep.subr.bf16.mxu0 0
      %1467 = vmatpush1.bf16.msra.mxu0 0
      %1468 = vmatprep.subr.bf16.mxu0 0
      %1469 = vmatpush1.bf16.msra.mxu0 0
      %1470 = vmatprep.subr.bf16.mxu0 0
      %1471 = vmatpush1.bf16.msra.mxu0 0
      %1472 = vmatprep.subr.bf16.mxu0 0
      %1473 = vmatpush1.bf16.msra.mxu0 0
      %1474 = vmatprep.subr.bf16.mxu0 0
      %1475 = vmatpush1.bf16.msra.mxu0 0
      %1476 = vmatprep.mubr.bf16.mxu0 0
      %1477 = vmatmul.mubr.bf16.gmra.mrb[0].mxu0 %v1357
      %v1478 = vpop.f32.mrb[0].mxu0
      %v1479 = vadd.f32 %v1394, %v1478
      %v1480 = vpop.f32.mrb[0].mxu0
      %v1481 = vpop.f32.mrb[0].mxu0
      %v1482 = vadd.f32 %v1394, %v1481
      %v1483 = vpop.f32.mrb[0].mxu0
      %1484 = vmatprep.mubr.bf16.mxu0 0
      %1485 = vmatmul.mubr.bf16.gmra.mrb[0].mxu0 %v1358
      %v1486 = vpop.f32.mrb[0].mxu0
      %v1487 = vadd.f32 %v1394, %v1486
      %v1488 = vpop.f32.mrb[0].mxu0
      %v1489 = vpop.f32.mrb[0].mxu0
      %v1490 = vadd.f32 %v1394, %v1489
      %v1491 = vpop.f32.mrb[0].mxu0
      %1492 = vmatprep.mubr.bf16.mxu0 0
      %1493 = vmatmul.mubr.bf16.gmra.mrb[0].mxu0 %v1359
      %v1494 = vpop.f32.mrb[0].mxu0
      %v1495 = vadd.f32 %v1394, %v1494
      %v1496 = vpop.f32.mrb[0].mxu0
      %v1497 = vpop.f32.mrb[0].mxu0
      %v1498 = vadd.f32 %v1394, %v1497
      %v1499 = vpop.f32.mrb[0].mxu0
      %1500 = vmatprep.mubr.bf16.mxu0 0
      %1501 = vmatmul.mubr.bf16.gmra.mrb[0].mxu0 %v1360
      %v1502 = vpop.f32.mrb[0].mxu0
      %v1503 = vadd.f32 %v1394, %v1502
      %v1504 = vpop.f32.mrb[0].mxu0
      %v1505 = vpop.f32.mrb[0].mxu0
      %v1506 = vadd.f32 %v1394, %v1505
      %v1507 = vpop.f32.mrb[0].mxu0
      %1508 = vmatprep.mubr.bf16.mxu0 0
      %1509 = vmatmul.mubr.bf16.gmra.mrb[0].mxu0 %v1361
      %v1510 = vpop.f32.mrb[0].mxu0
      %v1511 = vadd.f32 %v1394, %v1510
      %v1512 = vpop.f32.mrb[0].mxu0
      %v1513 = vpop.f32.mrb[0].mxu0
      %v1514 = vadd.f32 %v1394, %v1513
      %v1515 = vpop.f32.mrb[0].mxu0
      %1516 = vmatprep.mubr.bf16.mxu0 0
      %1517 = vmatmul.mubr.bf16.gmra.mrb[0].mxu0 %v1362
      %v1518 = vpop.f32.mrb[0].mxu0
      %v1519 = vadd.f32 %v1394, %v1518
      %v1520 = vpop.f32.mrb[0].mxu0
      %v1521 = vpop.f32.mrb[0].mxu0
      %v1522 = vadd.f32 %v1394, %v1521
      %v1523 = vpop.f32.mrb[0].mxu0
      %1524 = vmatprep.mubr.bf16.mxu0 0
      %1525 = vmatmul.mubr.bf16.gmra.mrb[0].mxu0 %v1363
      %v1526 = vpop.f32.mrb[0].mxu0
      %v1527 = vadd.f32 %v1394, %v1526
      %v1528 = vpop.f32.mrb[0].mxu0
      %v1529 = vpop.f32.mrb[0].mxu0
      %v1530 = vadd.f32 %v1394, %v1529
      %v1531 = vpop.f32.mrb[0].mxu0
      %1532 = vmatprep.mubr.bf16.mxu0 0
      %1533 = vmatmul.mubr.bf16.gmra.mrb[0].mxu0 %v1364
      %v1534 = vpop.f32.mrb[0].mxu0
      %v1535 = vadd.f32 %v1394, %v1534
      %v1536 = vpop.f32.mrb[0].mxu0
      %v1537 = vpop.f32.mrb[0].mxu0
      %v1538 = vadd.f32 %v1394, %v1537
      %v1539 = vpop.f32.mrb[0].mxu0
      %1540 = vmatprep.mubr.bf16.mxu0 0
      %1541 = vmatmul.mubr.bf16.gmra.mrb[0].mxu0 %v1365
      %v1542 = vpop.f32.mrb[0].mxu0
      %v1543 = vadd.f32 %v1394, %v1542
      %v1544 = vpop.f32.mrb[0].mxu0
      %v1545 = vpop.f32.mrb[0].mxu0
      %v1546 = vadd.f32 %v1394, %v1545
      %v1547 = vpop.f32.mrb[0].mxu0
      %1548 = vmatprep.mubr.bf16.mxu0 0
      %1549 = vmatmul.mubr.bf16.gmra.mrb[0].mxu0 %v1366
      %v1550 = vpop.f32.mrb[0].mxu0
      %v1551 = vadd.f32 %v1394, %v1550
      %v1552 = vpop.f32.mrb[0].mxu0
      %v1553 = vpop.f32.mrb[0].mxu0
      %v1554 = vadd.f32 %v1394, %v1553
      %v1555 = vpop.f32.mrb[0].mxu0
      %1556 = vmatprep.mubr.bf16.mxu0 0
      %1557 = vmatmul.mubr.bf16.gmra.mrb[0].mxu0 %v1367
      %v1558 = vpop.f32.mrb[0].mxu0
      %v1559 = vadd.f32 %v1394, %v1558
      %v1560 = vpop.f32.mrb[0].mxu0
      %v1561 = vpop.f32.mrb[0].mxu0
      %v1562 = vadd.f32 %v1394, %v1561
      %v1563 = vpop.f32.mrb[0].mxu0
      %1564 = vmatprep.mubr.bf16.mxu0 0
      %1565 = vmatmul.mubr.bf16.gmra.mrb[0].mxu0 %v1368
      %v1566 = vpop.f32.mrb[0].mxu0
      %v1567 = vadd.f32 %v1394, %v1566
      %v1568 = vpop.f32.mrb[0].mxu0
      %v1569 = vpop.f32.mrb[0].mxu0
      %v1570 = vadd.f32 %v1394, %v1569
      %v1571 = vpop.f32.mrb[0].mxu0
      %1572 = vmatprep.mubr.bf16.mxu0 0
      %1573 = vmatmul.mubr.bf16.gmra.mrb[0].mxu0 %v1369
      %v1574 = vpop.f32.mrb[0].mxu0
      %v1575 = vadd.f32 %v1394, %v1574
      %v1576 = vpop.f32.mrb[0].mxu0
      %v1577 = vpop.f32.mrb[0].mxu0
      %v1578 = vadd.f32 %v1394, %v1577
      %v1579 = vpop.f32.mrb[0].mxu0
      %1580 = vmatprep.mubr.bf16.mxu0 0
      %1581 = vmatmul.mubr.bf16.gmra.mrb[0].mxu0 %v1370
      %v1582 = vpop.f32.mrb[0].mxu0
      %v1583 = vadd.f32 %v1394, %v1582
      %v1584 = vpop.f32.mrb[0].mxu0
      %v1585 = vpop.f32.mrb[0].mxu0
      %v1586 = vadd.f32 %v1394, %v1585
      %v1587 = vpop.f32.mrb[0].mxu0
      %1588 = vmatprep.mubr.bf16.mxu0 0
      %1589 = vmatmul.mubr.bf16.gmra.mrb[0].mxu0 %v1371
      %v1590 = vpop.f32.mrb[0].mxu0
      %v1591 = vadd.f32 %v1394, %v1590
      %v1592 = vpop.f32.mrb[0].mxu0
      %v1593 = vpop.f32.mrb[0].mxu0
      %v1594 = vadd.f32 %v1394, %v1593
      %v1595 = vpop.f32.mrb[0].mxu0
      %1596 = vmatprep.mubr.bf16.mxu0 0
      %1597 = vmatmul.mubr.bf16.gmra.mrb[0].mxu0 %v1372
      %v1598 = vpop.f32.mrb[0].mxu0
      %v1599 = vadd.f32 %v1394, %v1598
      %v1600 = vpop.f32.mrb[0].mxu0
      %v1601 = vpop.f32.mrb[0].mxu0
      %v1602 = vadd.f32 %v1394, %v1601
      %v1603 = vpop.f32.mrb[0].mxu0
      %1604 = vdwg.mxu0
      %v1605 = vmax.f32 %v1479, 0.0
      %v1606 = vmax.f32 %v1482, 0.0
      %v1607 = vmax.f32 %v1487, 0.0
      %v1608 = vmax.f32 %v1490, 0.0
      %v1609 = vmax.f32 %v1495, 0.0
      %v1610 = vmax.f32 %v1498, 0.0
      %v1611 = vmax.f32 %v1503, 0.0
      %v1612 = vmax.f32 %v1506, 0.0
      %v1613 = vmax.f32 %v1511, 0.0
      %v1614 = vmax.f32 %v1514, 0.0
      %v1615 = vmax.f32 %v1519, 0.0
      %v1616 = vmax.f32 %v1522, 0.0
      %v1617 = vmax.f32 %v1527, 0.0
      %v1618 = vmax.f32 %v1530, 0.0
      %v1619 = vmax.f32 %v1535, 0.0
      %v1620 = vmax.f32 %v1538, 0.0
      %v1621 = vmax.f32 %v1543, 0.0
      %v1622 = vmax.f32 %v1546, 0.0
      %v1623 = vmax.f32 %v1551, 0.0
      %v1624 = vmax.f32 %v1554, 0.0
      %v1625 = vmax.f32 %v1559, 0.0
      %v1626 = vmax.f32 %v1562, 0.0
      %v1627 = vmax.f32 %v1567, 0.0
      %v1628 = vmax.f32 %v1570, 0.0
      %v1629 = vmax.f32 %v1575, 0.0
      %v1630 = vmax.f32 %v1578, 0.0
      %v1631 = vmax.f32 %v1583, 0.0
      %v1632 = vmax.f32 %v1586, 0.0
      %v1633 = vmax.f32 %v1591, 0.0
      %v1634 = vmax.f32 %v1594, 0.0
      %v1635 = vmax.f32 %v1599, 0.0
      %v1636 = vmax.f32 %v1602, 0.0
      %v1637 = vadd.f32 %v1605, %v1606
      %v1638 = vadd.f32 %v1637, %v1607
      %v1639 = vadd.f32 %v1638, %v1608
      %v1640 = vadd.f32 %v1639, %v1609
      %v1641 = vadd.f32 %v1640, %v1610
      %v1642 = vadd.f32 %v1641, %v1611
      %v1643 = vadd.f32 %v1642, %v1612
      %v1644 = vadd.f32 %v1643, %v1613
      %v1645 = vadd.f32 %v1644, %v1614
      %v1646 = vadd.f32 %v1645, %v1615
      %v1647 = vadd.f32 %v1646, %v1616
      %v1648 = vadd.f32 %v1647, %v1617
      %v1649 = vadd.f32 %v1648, %v1618
      %v1650 = vadd.f32 %v1649, %v1619
      %v1651 = vadd.f32 %v1650, %v1620
      %v1652 = vadd.f32 %v1651, %v1621
      %v1653 = vadd.f32 %v1652, %v1622
      %v1654 = vadd.f32 %v1653, %v1623
      %v1655 = vadd.f32 %v1654, %v1624
      %v1656 = vadd.f32 %v1655, %v1625
      %v1657 = vadd.f32 %v1656, %v1626
      %v1658 = vadd.f32 %v1657, %v1627
      %v1659 = vadd.f32 %v1658, %v1628
      %v1660 = vadd.f32 %v1659, %v1629
      %v1661 = vadd.f32 %v1660, %v1630
      %v1662 = vadd.f32 %v1661, %v1631
      %v1663 = vadd.f32 %v1662, %v1632
      %v1664 = vadd.f32 %v1663, %v1633
      %v1665 = vadd.f32 %v1664, %v1634
      %v1666 = vadd.f32 %v1665, %v1635
      %v1667 = vadd.f32 %v1666, %v1636
      %v1668 = vrot.slane %v1667, 4
      %v1669 = vadd.f32 %v1667, %v1668
      %v1670 = vrot.slane %v1669, 2
      %v1671 = vadd.f32 %v1669, %v1670
      %v1672 = vrot.slane %v1671, 1
      %v1673 = vadd.f32 %v1671, %v1672
      %1674 = vst [vmem:[%s310] sm:$0x1] %v1673
      %p1675 = scmp.lt.s32.totalorder %s22, 1
      %s1676 = scalar_select %p1675, %s22, 1
      %p1677 = scmp.lt.s32.totalorder %s23, 0
      %s1678 = scalar_select %p1677, %s23, 0
      %s1679 = sadd.s32 %s1678, %s1676
      %s1680 = scalar_lea.vmem %s7, %s1679
      // Predicated region
      $region49: #{netd1_forward.1} parent=47 // pred_check
        %p1681 = pneg %p204
      $region50: #{netd1_forward.1} parent=47 // pred_check_branch
        %1683 = sbr.rel (%p1681) target = $region52
      $region51: #{netd1_forward.1} parent=47 // pred_region
        _
      $region52: #{netd1_forward.1} parent=47 // pred_fallthru
        _
    $region48: #{netd1_forward.1} parent=5 // pred_fallthru
      _
    %p1684 = scmp.le.s32.totalorder 2, %s13
    // Predicated region
    $region53: #{netd1_forward.1} parent=5 // pred_check
      %p1685 = pneg %p1684
    $region54: #{netd1_forward.1} parent=5 // pred_check_branch
      %1687 = sbr.rel (%p1685) target = $region56
    $region55: #{netd1_forward.1} parent=5 // pred_region
      %s1688 = ssub.s32 %s13, 2
      // Predicated region
      $region57: #{netd1_forward.1} parent=55 // pred_check
        %p1689 = pneg %p210
      $region58: #{netd1_forward.1} parent=55 // pred_check_branch
        %1691 = sbr.rel (%p1689) target = $region60
      $region59: #{netd1_forward.1} parent=55 // pred_region
        %p1692 = scmp.lt.s32.totalorder %s24, 1
        %s1693 = scalar_select %p1692, %s24, 1
        %p1694 = scmp.lt.s32.totalorder %s25, 0
        %s1695 = scalar_select %p1694, %s25, 0
        %s1696 = sadd.s32 %s1695, %s1693
        %s1697 = scalar_lea.vmem %s7, %s1696
      $region60: #{netd1_forward.1} parent=55 // pred_fallthru
        _
    $region56: #{netd1_forward.1} parent=5 // pred_fallthru
      _
  $region6: #{netd1_forward.1} parent=0 // loop_footer
    %s17 = sadd.s32 1, %s13
  $region7: #{netd1_forward.1} parent=0 // loop_footer_branch
    %12 = sbr.rel target = $region3
  $region8: #{netd1_forward.1} parent=0 // loop_exit
    _

</llo_original>
